<compile_context>
chip_gen: v7x
topology: tpu7x:2x2x1
jax: 0.10.0
libtpu: 0.0.40
codegen_flags: <defaults>
</compile_context>

<pallas_src>
import functools

import jax
import jax.numpy as jnp
from jax.experimental import pallas as pl
from jax.experimental.pallas import tpu as pltpu


# ------------------------------ helpers -------------------------------------

_SUPPORTED_ACTS = ("Sigmoid", "Tanh", "ReLU", "Identity")


def _round_up(x: int, m: int) -> int:
    return ((x + m - 1) // m) * m


def _pad_to(a, shape):
    pads = [(0, s - d) for d, s in zip(a.shape, shape)]
    return jnp.pad(a, pads)


def _apply_act(y, act_fun: str, fast: bool = False):
    if act_fun == "Sigmoid":
        if fast:
            # sigmoid(y) == 0.5 * tanh(0.5*y) + 0.5 : one EUP op per vreg
            # instead of exp + divide (EUP is the single-slot unit).
            return 0.5 * jnp.tanh(0.5 * y) + 0.5
        return jax.nn.sigmoid(y)
    if act_fun == "Tanh":
        return jnp.tanh(y)
    if act_fun == "ReLU":
        return jnp.maximum(y, 0.0)
    if act_fun == "Identity":
        return y
    # TODO(synk): only Sigmoid/Tanh/ReLU/Identity are mapped; other torch.nn
    # activations would need explicit handling here.
    raise ValueError(f"Unsupported activation: {act_fun}")


# ----------------------------- Pallas kernel --------------------------------

def _mlp_kernel(*refs, act_funs, compute_dtype):
    """Fused forward pass of the whole MLP for one batch tile.

    refs layout: (x_ref, w0_ref, b0_ref, w1_ref, b1_ref, ..., o_ref)
      x_ref : (TB, in_pad0)          VMEM, compute_dtype (no upcast needed)
      wi_ref: (in_pad_i, out_pad_i)  VMEM, compute_dtype (pre-transposed,
                                     zero-padded -> padded lanes annihilated)
      bi_ref: (1, out_pad_i)         VMEM, f32 (epilogue stays f32; v5e-safe)
      o_ref : (TB, out_pad_last)     VMEM, f32 (lane-dense unmasked stores)
    Intermediate activations stay in VMEM/vregs for the whole chain.
    """
    n_layers = len(act_funs)
    x_ref, o_ref = refs[0], refs[-1]
    wb_refs = refs[1:-1]

    h = x_ref[...]                              # already compute_dtype
    for i in range(n_layers):
        w = wb_refs[2 * i][...]                 # compute_dtype
        b = wb_refs[2 * i + 1][...]             # f32
        # MXU matmul with f32 accumulation; bias add + activation stay f32.
        y = jnp.dot(h.astype(compute_dtype), w,
                    preferred_element_type=jnp.float32)
        y = y + b
        h = _apply_act(y, act_funs[i], fast=True)

    o_ref[...] = h.astype(o_ref.dtype)


# --------------------------- SequentialNN wrapper ---------------------------

class SequentialNN:
    """JAX/Pallas equivalent of the PyTorch SequentialNN module.

    layers: list of dicts [{'input': int, 'output': int, 'act_fun': str}, ...]
    Parameters are initialized with PyTorch nn.Linear's default scheme:
    U(-1/sqrt(fan_in), 1/sqrt(fan_in)) for both W and b.
    """

    def __init__(self, layers, key, compute_dtype=jnp.bfloat16):
        self.layer_specs = layers
        self.act_funs = tuple(l["act_fun"] for l in layers)
        for a in self.act_funs:
            if a not in _SUPPORTED_ACTS:
                raise ValueError(f"Unsupported activation: {a}")
        self.compute_dtype = compute_dtype
        self._single_buffer_weights = None      # decided on first call

        self.params = []          # unpadded f32 (w (in,out), b (out,)) for reference
        self.padded_params = []   # padded (w (in_pad,out_pad) cdt, b (1,out_pad) f32)
        self.in_pads = []
        self.out_pads = []
        for layer in layers:
            key, wk, bk = jax.random.split(key, 3)
            fan_in, fan_out = layer["input"], layer["output"]
            bound = 1.0 / jnp.sqrt(jnp.float32(fan_in))
            # Store W as (in, out) — transposed relative to PyTorch's (out, in).
            w = jax.random.uniform(wk, (fan_in, fan_out), jnp.float32,
                                   minval=-bound, maxval=bound)
            b = jax.random.uniform(bk, (fan_out,), jnp.float32,
                                   minval=-bound, maxval=bound)
            self.params.append((w, b))

            in_pad = _round_up(fan_in, 128)
            out_pad = _round_up(fan_out, 128)
            self.in_pads.append(in_pad)
            self.out_pads.append(out_pad)
            # Zero padding invariant: padded *input rows* of W are zero, so any
            # garbage in the previous layer's padded output lanes contributes 0.
            w_p = _pad_to(w, (in_pad, out_pad)).astype(compute_dtype)
            b_p = _pad_to(b.reshape(1, fan_out), (1, out_pad)).astype(jnp.float32)
            self.padded_params.append((w_p, b_p))

    def __call__(self, x):
        batch, in_f = x.shape
        assert in_f == self.layer_specs[0]["input"]
        cdt = self.compute_dtype
        itemsize = jnp.dtype(cdt).itemsize
        sub = 16 if itemsize < 4 else 8         # sublane granule (packed bf16)

        # Batch tiling: cap at 512 rows; when the batch allows it, use >= 2
        # grid steps so the "parallel" axis can shard across v7x's 2 TCs.
        if batch >= 2 * sub:
            tb = min(512, _round_up(pl.cdiv(batch, 2), sub))
        else:
            tb = _round_up(max(batch, 1), sub)
        b_pad = _round_up(batch, tb)
        grid = (pl.cdiv(b_pad, tb),)

        in_pad0 = self.in_pads[0]
        out_pad = self.out_pads[-1]
        out_f = self.layer_specs[-1]["output"]

        # Feed x already in compute_dtype: halves the only batch-scaling DMA
        # (and its double-buffer footprint) when compute_dtype is bf16.
        x_p = _pad_to(x.astype(cdt), (b_pad, in_pad0))

        args = [x_p]
        for (w_p, b_p) in self.padded_params:
            args.append(w_p)
            args.append(b_p)

        # Explicit VMEM budget: double-buffered x/out tiles + (<=2x) resident
        # weights/biases + headroom for activation temporaries.
        x_tile_b = tb * in_pad0 * itemsize
        out_tile_b = tb * out_pad * 4
        wb_b = sum(ip * op * itemsize + op * 4
                   for ip, op in zip(self.in_pads, self.out_pads))
        max_pad = max([in_pad0] + self.out_pads)
        act_b = 4 * tb * max_pad * 4
        est = 2 * (x_tile_b + out_tile_b) + 2 * wb_b + act_b
        vmem_limit = max(8 << 20, min(int(1.5 * est) + (1 << 20), 64 << 20))

        kernel = functools.partial(_mlp_kernel,
                                   act_funs=self.act_funs,
                                   compute_dtype=cdt)

        def make_in_specs(weight_mode):
            kw = {} if weight_mode is None else {"pipeline_mode": weight_mode}
            specs = [pl.BlockSpec((tb, in_pad0), lambda i: (i, 0))]
            for (w_p, b_p) in self.padded_params:
                # Constant index_map -> same block every batch tile (resident).
                specs.append(pl.BlockSpec(w_p.shape, lambda i: (0, 0), **kw))
                specs.append(pl.BlockSpec(b_p.shape, lambda i: (0, 0), **kw))
            return specs

        def run(weight_mode):
            return pl.pallas_call(
                kernel,
                out_shape=jax.ShapeDtypeStruct((b_pad, out_pad), jnp.float32),
                grid=grid,
                in_specs=make_in_specs(weight_mode),
                out_specs=pl.BlockSpec((tb, out_pad), lambda i: (i, 0)),
                compiler_params=pltpu.CompilerParams(
                    dimension_semantics=("parallel",),
                    vmem_limit_bytes=vmem_limit),
            )(*args)

        if self._single_buffer_weights is None:
            # Weight/bias blocks never change -> single-buffer them
            # (pl.Buffered(1)) to halve their resident VMEM footprint (matters
            # most on v7x's 64 MiB/TC). Fall back to default double-buffering
            # if this JAX/Mosaic build rejects buffer_count=1.
            try:
                out_padded = jax.block_until_ready(run(pl.Buffered(1)))
                self._single_buffer_weights = True
            except Exception:
                out_padded = run(None)
                self._single_buffer_weights = False
        else:
            mode = pl.Buffered(1) if self._single_buffer_weights else None
            out_padded = run(mode)

        # TODO(synk): out_f << 128 still writes 128 padded lanes and the slice
        # below is an extra XLA copy; accepted here (tiny output), revisit for
        # wide final layers.
        return out_padded[:batch, :out_f]

    # ------------------------------ references ------------------------------

    def reference(self, x):
        """Pure-f32 JAX reference (exact PyTorch-module semantics)."""
        h = x
        for (w, b), spec in zip(self.params, self.layer_specs):
            h = _apply_act(h @ w + b, spec["act_fun"])
        return h

    def reference_matched(self, x):
        """Reference mirroring the kernel's dtypes: compute_dtype MXU operands,
        f32 accumulation, f32 bias/activation epilogue."""
        h = x
        for (w, b), spec in zip(self.params, self.layer_specs):
            y = jnp.dot(h.astype(self.compute_dtype),
                        w.astype(self.compute_dtype),
                        preferred_element_type=jnp.float32)
            h = _apply_act(y + b, spec["act_fun"], fast=True)
        return h


# --------------------------------- main --------------------------------------

if __name__ == "__main__":
    key = jax.random.PRNGKey(0)
    key, xk, pk = jax.random.split(key, 3)

    layers = [
        {"input": 32, "output": 64, "act_fun": "Sigmoid"},
        {"input": 64, "output": 64, "act_fun": "Tanh"},
        {"input": 64, "output": 16, "act_fun": "Identity"},
    ]
    batch = 32   # -> tb=16, grid=(2,): exercises multi-step parallel batch axis

    model = SequentialNN(layers, pk)   # default compute_dtype = bfloat16
    x = jax.random.normal(xk, (batch, layers[0]["input"]), jnp.float32)

    out = jax.block_until_ready(model(x))
    assert out.shape == (batch, layers[-1]["output"])

    # Tight check vs. a reference with identical operand dtypes.
    ref_matched = model.reference_matched(x)
    assert jnp.allclose(out, ref_matched, atol=2e-3, rtol=2e-3), (
        float(jnp.max(jnp.abs(out - ref_matched))))

    # Loose check vs. pure-f32 math (bf16 MXU operand quantization only).
    ref_f32 = model.reference(x)
    assert jnp.allclose(out, ref_f32, atol=5e-2, rtol=5e-2), (
        float(jnp.max(jnp.abs(out - ref_f32))))

    print("KERNEL_OK")
</pallas_src>

<mosaic_0001>
module attributes {stable_mosaic.version = 11 : i64} {
  func.func @_mlp_kernel(%arg0: i32, %arg1: memref<16x128xbf16, #tpu.memory_space<vmem>>, %arg2: memref<128x128xbf16, #tpu.memory_space<vmem>>, %arg3: memref<1x128xf32, #tpu.memory_space<vmem>>, %arg4: memref<128x128xbf16, #tpu.memory_space<vmem>>, %arg5: memref<1x128xf32, #tpu.memory_space<vmem>>, %arg6: memref<128x128xbf16, #tpu.memory_space<vmem>>, %arg7: memref<1x128xf32, #tpu.memory_space<vmem>>, %arg8: memref<16x128xf32, #tpu.memory_space<vmem>>) attributes {dimension_semantics = [#tpu.dimension_semantics<parallel>], iteration_bounds = array<i64: 2>, scalar_prefetch = 0 : i64, scratch_operands = 0 : i64, tpu.core_type = #tpu.core_type<tc>, window_params = [{transform_indices = @transform_0, window_bounds = array<i64: 16, 128>}, {pipeline_mode = #tpu.pipeline_mode<synchronous>, transform_indices = @transform_1, window_bounds = array<i64: 128, 128>}, {pipeline_mode = #tpu.pipeline_mode<synchronous>, transform_indices = @transform_2, window_bounds = array<i64: 1, 128>}, {pipeline_mode = #tpu.pipeline_mode<synchronous>, transform_indices = @transform_3, window_bounds = array<i64: 128, 128>}, {pipeline_mode = #tpu.pipeline_mode<synchronous>, transform_indices = @transform_4, window_bounds = array<i64: 1, 128>}, {pipeline_mode = #tpu.pipeline_mode<synchronous>, transform_indices = @transform_5, window_bounds = array<i64: 128, 128>}, {pipeline_mode = #tpu.pipeline_mode<synchronous>, transform_indices = @transform_6, window_bounds = array<i64: 1, 128>}, {transform_indices = @transform_7, window_bounds = array<i64: 16, 128>}]} {
    %c0 = arith.constant 0 : index
    %c0_0 = arith.constant 0 : index
    %0 = vector.load %arg1[%c0, %c0_0] : memref<16x128xbf16, #tpu.memory_space<vmem>>, vector<16x128xbf16>
    %c0_1 = arith.constant 0 : index
    %c0_2 = arith.constant 0 : index
    %1 = vector.load %arg2[%c0_1, %c0_2] : memref<128x128xbf16, #tpu.memory_space<vmem>>, vector<128x128xbf16>
    %c0_3 = arith.constant 0 : index
    %c0_4 = arith.constant 0 : index
    %2 = vector.load %arg3[%c0_3, %c0_4] : memref<1x128xf32, #tpu.memory_space<vmem>>, vector<1x128xf32>
    %cst = arith.constant dense<0.000000e+00> : vector<16x128xf32>
    %3 = tpu.matmul %0, %1, %cst {dimension_numbers = #tpu.dot_dimension_numbers<[1], [0], [0], [1], [0, 0, 1, 1], [], []>} : vector<16x128xbf16>, vector<128x128xbf16>, vector<16x128xf32> -> vector<16x128xf32>
    %4 = vector.broadcast %2 : vector<1x128xf32> to vector<16x128xf32>
    %5 = arith.addf %3, %4 : vector<16x128xf32>
    %cst_5 = arith.constant 5.000000e-01 : f32
    %6 = vector.broadcast %cst_5 : f32 to vector<16x128xf32>
    %7 = arith.mulf %6, %5 : vector<16x128xf32>
    %8 = math.tanh %7 : vector<16x128xf32>
    %cst_6 = arith.constant 5.000000e-01 : f32
    %9 = vector.broadcast %cst_6 : f32 to vector<16x128xf32>
    %10 = arith.mulf %9, %8 : vector<16x128xf32>
    %cst_7 = arith.constant 5.000000e-01 : f32
    %11 = vector.broadcast %cst_7 : f32 to vector<16x128xf32>
    %12 = arith.addf %10, %11 : vector<16x128xf32>
    %c0_8 = arith.constant 0 : index
    %c0_9 = arith.constant 0 : index
    %13 = vector.load %arg4[%c0_8, %c0_9] : memref<128x128xbf16, #tpu.memory_space<vmem>>, vector<128x128xbf16>
    %c0_10 = arith.constant 0 : index
    %c0_11 = arith.constant 0 : index
    %14 = vector.load %arg5[%c0_10, %c0_11] : memref<1x128xf32, #tpu.memory_space<vmem>>, vector<1x128xf32>
    %15 = arith.truncf %12 : vector<16x128xf32> to vector<16x128xbf16>
    %cst_12 = arith.constant dense<0.000000e+00> : vector<16x128xf32>
    %16 = tpu.matmul %15, %13, %cst_12 {dimension_numbers = #tpu.dot_dimension_numbers<[1], [0], [0], [1], [0, 0, 1, 1], [], []>} : vector<16x128xbf16>, vector<128x128xbf16>, vector<16x128xf32> -> vector<16x128xf32>
    %17 = vector.broadcast %14 : vector<1x128xf32> to vector<16x128xf32>
    %18 = arith.addf %16, %17 : vector<16x128xf32>
    %19 = math.tanh %18 : vector<16x128xf32>
    %c0_13 = arith.constant 0 : index
    %c0_14 = arith.constant 0 : index
    %20 = vector.load %arg6[%c0_13, %c0_14] : memref<128x128xbf16, #tpu.memory_space<vmem>>, vector<128x128xbf16>
    %c0_15 = arith.constant 0 : index
    %c0_16 = arith.constant 0 : index
    %21 = vector.load %arg7[%c0_15, %c0_16] : memref<1x128xf32, #tpu.memory_space<vmem>>, vector<1x128xf32>
    %22 = arith.truncf %19 : vector<16x128xf32> to vector<16x128xbf16>
    %cst_17 = arith.constant dense<0.000000e+00> : vector<16x128xf32>
    %23 = tpu.matmul %22, %20, %cst_17 {dimension_numbers = #tpu.dot_dimension_numbers<[1], [0], [0], [1], [0, 0, 1, 1], [], []>} : vector<16x128xbf16>, vector<128x128xbf16>, vector<16x128xf32> -> vector<16x128xf32>
    %24 = vector.broadcast %21 : vector<1x128xf32> to vector<16x128xf32>
    %25 = arith.addf %23, %24 : vector<16x128xf32>
    %c0_18 = arith.constant 0 : index
    %c0_19 = arith.constant 0 : index
    %26 = vector.load %arg8[%c0_18, %c0_19] : memref<16x128xf32, #tpu.memory_space<vmem>>, vector<16x128xf32>
    tpu.vector_store %arg8[%c0_18, %c0_19], %25 {strides = array<i32>} : memref<16x128xf32, #tpu.memory_space<vmem>>, vector<16x128xf32>,
    return
  }
  func.func @transform_0(%arg0: i32) -> (i32, i32) {
    %c0_i32 = arith.constant 0 : i32
    %c0_i32_0 = arith.constant 0 : i32
    return %arg0, %c0_i32 : i32, i32
  }
  func.func @transform_1(%arg0: i32) -> (i32, i32) {
    %c0_i32 = arith.constant 0 : i32
    %c0_i32_0 = arith.constant 0 : i32
    %c0_i32_1 = arith.constant 0 : i32
    return %c0_i32, %c0_i32_0 : i32, i32
  }
  func.func @transform_2(%arg0: i32) -> (i32, i32) {
    %c0_i32 = arith.constant 0 : i32
    %c0_i32_0 = arith.constant 0 : i32
    %c0_i32_1 = arith.constant 0 : i32
    return %c0_i32, %c0_i32_0 : i32, i32
  }
  func.func @transform_3(%arg0: i32) -> (i32, i32) {
    %c0_i32 = arith.constant 0 : i32
    %c0_i32_0 = arith.constant 0 : i32
    %c0_i32_1 = arith.constant 0 : i32
    return %c0_i32, %c0_i32_0 : i32, i32
  }
  func.func @transform_4(%arg0: i32) -> (i32, i32) {
    %c0_i32 = arith.constant 0 : i32
    %c0_i32_0 = arith.constant 0 : i32
    %c0_i32_1 = arith.constant 0 : i32
    return %c0_i32, %c0_i32_0 : i32, i32
  }
  func.func @transform_5(%arg0: i32) -> (i32, i32) {
    %c0_i32 = arith.constant 0 : i32
    %c0_i32_0 = arith.constant 0 : i32
    %c0_i32_1 = arith.constant 0 : i32
    return %c0_i32, %c0_i32_0 : i32, i32
  }
  func.func @transform_6(%arg0: i32) -> (i32, i32) {
    %c0_i32 = arith.constant 0 : i32
    %c0_i32_0 = arith.constant 0 : i32
    %c0_i32_1 = arith.constant 0 : i32
    return %c0_i32, %c0_i32_0 : i32, i32
  }
  func.func @transform_7(%arg0: i32) -> (i32, i32) {
    %c0_i32 = arith.constant 0 : i32
    %c0_i32_0 = arith.constant 0 : i32
    return %arg0, %c0_i32 : i32, i32
  }
}

module attributes {stable_mosaic.version = 11 : i64} {
  func.func @_mlp_kernel(%arg0: i32, %arg1: memref<16x128xbf16, #tpu.memory_space<vmem>>, %arg2: memref<128x128xbf16, #tpu.memory_space<vmem>>, %arg3: memref<1x128xf32, #tpu.memory_space<vmem>>, %arg4: memref<128x128xbf16, #tpu.memory_space<vmem>>, %arg5: memref<1x128xf32, #tpu.memory_space<vmem>>, %arg6: memref<128x128xbf16, #tpu.memory_space<vmem>>, %arg7: memref<1x128xf32, #tpu.memory_space<vmem>>, %arg8: memref<16x128xf32, #tpu.memory_space<vmem>>) attributes {dimension_semantics = [#tpu.dimension_semantics<parallel>], iteration_bounds = array<i64: 2>, scalar_prefetch = 0 : i64, scratch_operands = 0 : i64, tpu.core_type = #tpu.core_type<tc>, window_params = [{transform_indices = @transform_0, window_bounds = array<i64: 16, 128>}, {pipeline_mode = #tpu.pipeline_mode<synchronous>, transform_indices = @transform_1, window_bounds = array<i64: 128, 128>}, {pipeline_mode = #tpu.pipeline_mode<synchronous>, transform_indices = @transform_2, window_bounds = array<i64: 1, 128>}, {pipeline_mode = #tpu.pipeline_mode<synchronous>, transform_indices = @transform_3, window_bounds = array<i64: 128, 128>}, {pipeline_mode = #tpu.pipeline_mode<synchronous>, transform_indices = @transform_4, window_bounds = array<i64: 1, 128>}, {pipeline_mode = #tpu.pipeline_mode<synchronous>, transform_indices = @transform_5, window_bounds = array<i64: 128, 128>}, {pipeline_mode = #tpu.pipeline_mode<synchronous>, transform_indices = @transform_6, window_bounds = array<i64: 1, 128>}, {transform_indices = @transform_7, window_bounds = array<i64: 16, 128>}]} {
    %c0 = arith.constant 0 : index
    %c0_0 = arith.constant 0 : index
    %0 = vector.load %arg1[%c0, %c0_0] : memref<16x128xbf16, #tpu.memory_space<vmem>>, vector<16x128xbf16>
    %c0_1 = arith.constant 0 : index
    %c0_2 = arith.constant 0 : index
    %1 = vector.load %arg2[%c0_1, %c0_2] : memref<128x128xbf16, #tpu.memory_space<vmem>>, vector<128x128xbf16>
    %c0_3 = arith.constant 0 : index
    %c0_4 = arith.constant 0 : index
    %2 = vector.load %arg3[%c0_3, %c0_4] : memref<1x128xf32, #tpu.memory_space<vmem>>, vector<1x128xf32>
    %cst = arith.constant dense<0.000000e+00> : vector<16x128xf32>
    %3 = tpu.matmul %0, %1, %cst {dimension_numbers = #tpu.dot_dimension_numbers<[1], [0], [0], [1], [0, 0, 1, 1], [], []>} : vector<16x128xbf16>, vector<128x128xbf16>, vector<16x128xf32> -> vector<16x128xf32>
    %4 = vector.broadcast %2 : vector<1x128xf32> to vector<16x128xf32>
    %5 = arith.addf %3, %4 : vector<16x128xf32>
    %cst_5 = arith.constant 5.000000e-01 : f32
    %6 = vector.broadcast %cst_5 : f32 to vector<16x128xf32>
    %7 = arith.mulf %6, %5 : vector<16x128xf32>
    %8 = math.tanh %7 : vector<16x128xf32>
    %cst_6 = arith.constant 5.000000e-01 : f32
    %9 = vector.broadcast %cst_6 : f32 to vector<16x128xf32>
    %10 = arith.mulf %9, %8 : vector<16x128xf32>
    %cst_7 = arith.constant 5.000000e-01 : f32
    %11 = vector.broadcast %cst_7 : f32 to vector<16x128xf32>
    %12 = arith.addf %10, %11 : vector<16x128xf32>
    %c0_8 = arith.constant 0 : index
    %c0_9 = arith.constant 0 : index
    %13 = vector.load %arg4[%c0_8, %c0_9] : memref<128x128xbf16, #tpu.memory_space<vmem>>, vector<128x128xbf16>
    %c0_10 = arith.constant 0 : index
    %c0_11 = arith.constant 0 : index
    %14 = vector.load %arg5[%c0_10, %c0_11] : memref<1x128xf32, #tpu.memory_space<vmem>>, vector<1x128xf32>
    %15 = arith.truncf %12 : vector<16x128xf32> to vector<16x128xbf16>
    %cst_12 = arith.constant dense<0.000000e+00> : vector<16x128xf32>
    %16 = tpu.matmul %15, %13, %cst_12 {dimension_numbers = #tpu.dot_dimension_numbers<[1], [0], [0], [1], [0, 0, 1, 1], [], []>} : vector<16x128xbf16>, vector<128x128xbf16>, vector<16x128xf32> -> vector<16x128xf32>
    %17 = vector.broadcast %14 : vector<1x128xf32> to vector<16x128xf32>
    %18 = arith.addf %16, %17 : vector<16x128xf32>
    %19 = math.tanh %18 : vector<16x128xf32>
    %c0_13 = arith.constant 0 : index
    %c0_14 = arith.constant 0 : index
    %20 = vector.load %arg6[%c0_13, %c0_14] : memref<128x128xbf16, #tpu.memory_space<vmem>>, vector<128x128xbf16>
    %c0_15 = arith.constant 0 : index
    %c0_16 = arith.constant 0 : index
    %21 = vector.load %arg7[%c0_15, %c0_16] : memref<1x128xf32, #tpu.memory_space<vmem>>, vector<1x128xf32>
    %22 = arith.truncf %19 : vector<16x128xf32> to vector<16x128xbf16>
    %cst_17 = arith.constant dense<0.000000e+00> : vector<16x128xf32>
    %23 = tpu.matmul %22, %20, %cst_17 {dimension_numbers = #tpu.dot_dimension_numbers<[1], [0], [0], [1], [0, 0, 1, 1], [], []>} : vector<16x128xbf16>, vector<128x128xbf16>, vector<16x128xf32> -> vector<16x128xf32>
    %24 = vector.broadcast %21 : vector<1x128xf32> to vector<16x128xf32>
    %25 = arith.addf %23, %24 : vector<16x128xf32>
    %c0_18 = arith.constant 0 : index
    %c0_19 = arith.constant 0 : index
    %26 = vector.load %arg8[%c0_18, %c0_19] : memref<16x128xf32, #tpu.memory_space<vmem>>, vector<16x128xf32>
    tpu.vector_store %arg8[%c0_18, %c0_19], %25 {strides = array<i32>} : memref<16x128xf32, #tpu.memory_space<vmem>>, vector<16x128xf32>,
    return
  }
  func.func @transform_0(%arg0: i32) -> (i32, i32) {
    %c0_i32 = arith.constant 0 : i32
    %c0_i32_0 = arith.constant 0 : i32
    return %arg0, %c0_i32 : i32, i32
  }
  func.func @transform_1(%arg0: i32) -> (i32, i32) {
    %c0_i32 = arith.constant 0 : i32
    %c0_i32_0 = arith.constant 0 : i32
    %c0_i32_1 = arith.constant 0 : i32
    return %c0_i32, %c0_i32_0 : i32, i32
  }
  func.func @transform_2(%arg0: i32) -> (i32, i32) {
    %c0_i32 = arith.constant 0 : i32
    %c0_i32_0 = arith.constant 0 : i32
    %c0_i32_1 = arith.constant 0 : i32
    return %c0_i32, %c0_i32_0 : i32, i32
  }
  func.func @transform_3(%arg0: i32) -> (i32, i32) {
    %c0_i32 = arith.constant 0 : i32
    %c0_i32_0 = arith.constant 0 : i32
    %c0_i32_1 = arith.constant 0 : i32
    return %c0_i32, %c0_i32_0 : i32, i32
  }
  func.func @transform_4(%arg0: i32) -> (i32, i32) {
    %c0_i32 = arith.constant 0 : i32
    %c0_i32_0 = arith.constant 0 : i32
    %c0_i32_1 = arith.constant 0 : i32
    return %c0_i32, %c0_i32_0 : i32, i32
  }
  func.func @transform_5(%arg0: i32) -> (i32, i32) {
    %c0_i32 = arith.constant 0 : i32
    %c0_i32_0 = arith.constant 0 : i32
    %c0_i32_1 = arith.constant 0 : i32
    return %c0_i32, %c0_i32_0 : i32, i32
  }
  func.func @transform_6(%arg0: i32) -> (i32, i32) {
    %c0_i32 = arith.constant 0 : i32
    %c0_i32_0 = arith.constant 0 : i32
    %c0_i32_1 = arith.constant 0 : i32
    return %c0_i32, %c0_i32_0 : i32, i32
  }
  func.func @transform_7(%arg0: i32) -> (i32, i32) {
    %c0_i32 = arith.constant 0 : i32
    %c0_i32_0 = arith.constant 0 : i32
    return %arg0, %c0_i32 : i32, i32
  }
}

</mosaic_0001>

<llo_original>
// kernel: tpu_custom_call.1
$region0: #{tpu_custom_call.1}
  #allocation0 [shape = 'u32[]', space=smem, size = 0x4, offset = 0x4, fixed_abs, tag = 'smem constant byte address 0x4 - core index']
  #allocation1 [shape = 'u32[144,128]{1,0:T(1,128)}', space=vmem, size = 0x12000, scoped, tag = 'internal scratch']
  %s0 = inlined_call_operand.hbm [shape: bf16[32,128], index: 0, kind: input, shape index: {}]
  %s1 = inlined_call_operand.hbm [shape: bf16[128,128], index: 1, kind: input, shape index: {}]
  %s2 = inlined_call_operand.vmem [shape: f32[1,128], index: 2, kind: input, shape index: {}]
  %s3 = inlined_call_operand.hbm [shape: bf16[128,128], index: 3, kind: input, shape index: {}]
  %s4 = inlined_call_operand.vmem [shape: f32[1,128], index: 4, kind: input, shape index: {}]
  %s5 = inlined_call_operand.hbm [shape: bf16[128,128], index: 5, kind: input, shape index: {}]
  %s6 = inlined_call_operand.vmem [shape: f32[1,128], index: 6, kind: input, shape index: {}]
  %s7 = inlined_call_operand.hbm [shape: f32[32,128], index: 7, kind: output, shape index: {}]
  %s8 = sld [smem:[#allocation0]]
  $region77: #{tpu_custom_call.1} parent=0
    _
  %s10 = ssub.s32 1, %s8
  %s11 = scalar_select 0, %s10, %s8
  $region1: #{tpu_custom_call.1} parent=0
    #allocation2 [shape = 'u8[8192]{0}', space=vmem, size = 0x2000, scoped, tag = 'input window, operand 0']
    #allocation3 [shape = 's32[2]{0}', space=sflag, size = 0x8, scoped, tag = 'scoped memory for tpu_custom_call.1']
    #allocation4 [shape = 's32[2]{0}', space=sflag, size = 0x8, scoped, tag = 'scoped memory for tpu_custom_call.1']
    #allocation5 [shape = 'u8[32768]{0}', space=vmem, size = 0x8000, scoped, tag = 'input window, operand 1, single buffered']
    #allocation6 [shape = 's32[1]{0}', space=sflag, size = 0x4, scoped, tag = 'scoped memory for tpu_custom_call.1']
    #allocation7 [shape = 'u8[32768]{0}', space=vmem, size = 0x8000, scoped, tag = 'input window, operand 3, single buffered']
    #allocation8 [shape = 'u8[32768]{0}', space=vmem, size = 0x8000, scoped, tag = 'input window, operand 5, single buffered']
    #allocation9 [shape = 's32[1]{0}', space=sflag, size = 0x4, scoped, tag = 'scoped memory for tpu_custom_call.1']
    #allocation10 [shape = 'u8[16384]{0}', space=vmem, size = 0x4000, scoped, tag = 'output window, operand 0']
    %12 = vsyncpa [#allocation3], 0
    %s13 = scalar_lea.sflag [#allocation3], 1
    %14 = vsyncpa %s13, 0
    %15 = vsyncpa [#allocation6], 0
    %16 = vsyncpa [#allocation9], 0
    %17 = vsyncpa [#allocation4], 0
    %s18 = scalar_lea.sflag [#allocation4], 1
    %19 = vsyncpa %s18, 0
    loop: start=0, step=1, limit=4
    $region2: #{tpu_custom_call.1} parent=1 // loop_pre_header
      _
    $region3: #{tpu_custom_call.1} parent=1 // loop_header
      %s21 = sphi 0, %s25
      %p22 = scmp.ge.s32.totalorder %s21, 4
      %s31 = sphi 0, %s33
      %s34 = sphi 0, %s31
      %s35 = sphi 0, %s34
      %s51 = sphi 0, %s35
      %s55 = sphi 0, %s55
      %s57 = sphi 0, %s55
      %s58 = sphi 0, %s57
      %s72 = sphi 0, %s58
      %s76 = sphi 0, %s76
      %s78 = sphi 0, %s76
      %s79 = sphi 0, %s78
      %s93 = sphi 0, %s79
      %s97 = sphi 0, %s97
      %s99 = sphi 0, %s97
      %s100 = sphi 0, %s99
      %s114 = sphi 0, %s100
      %s118 = sphi 0, %s118
      %s120 = sphi 0, %s118
      %s121 = sphi 0, %s120
      %s135 = sphi 0, %s121
      %s139 = sphi 0, %s139
      %s141 = sphi 0, %s139
      %s142 = sphi 0, %s141
      %s156 = sphi 0, %s142
      %s160 = sphi 0, %s160
      %s162 = sphi 0, %s160
      %s163 = sphi 0, %s162
      %s177 = sphi 0, %s163
      %s183 = sphi 0, %s185
      %s186 = sphi 0, %s183
      %s187 = sphi 0, %s186
      %s203 = sphi 0, %s187
    $region4: #{tpu_custom_call.1} parent=1 // loop_header_branch
      %24 = sbr.rel (%p22) target = $region8
    $region5: #{tpu_custom_call.1} parent=1 // loop_body
      %s26 = ssub.s32 %s21, 1
      %s27 = ssub.s32 %s21, 2
      %s28 = sadd.s32 %s21, 1
      %s29 = ssub.s32 %s21, %s28
      %p30 = scmp.eq.s32.totalorder %s29, 0
      %s32 = sadd.s32 %s31, 1
      %s33 = scalar_select %p30, %s31, %s32
      %p36 = pneg %p30
      %p37 = scmp.eq.s32.totalorder %s21, 1
      %p38 = por %p36, %p37
      %p39 = scmp.ne.s32.totalorder %s31, %s34
      %p40 = scmp.eq.s32.totalorder %s21, 0
      %p41 = por %p39, %p40
      %p42 = scmp.ne.s32.totalorder %s31, %s34
      %p43 = scmp.eq.s32.totalorder %s26, 1
      %p44 = por %p42, %p43
      %p45 = scmp.ne.s32.totalorder %s34, %s35
      %p46 = scmp.eq.s32.totalorder %s26, 0
      %p47 = por %p45, %p46
      %p48 = scmp.ne.s32.totalorder %s34, %s35
      %p49 = scmp.eq.s32.totalorder %s27, 1
      %p50 = por %p48, %p49
      %p52 = scmp.ne.s32.totalorder %s35, %s51
      %p53 = scmp.eq.s32.totalorder %s27, 0
      %p54 = por %p52, %p53
      %s56 = sadd.s32 %s55, 1
      %p59 = scmp.eq.s32.totalorder %s21, 1
      %p60 = scmp.ne.s32.totalorder %s55, %s57
      %p61 = scmp.eq.s32.totalorder %s21, 0
      %p62 = por %p60, %p61
      %p63 = scmp.ne.s32.totalorder %s55, %s57
      %p64 = scmp.eq.s32.totalorder %s26, 1
      %p65 = por %p63, %p64
      %p66 = scmp.ne.s32.totalorder %s57, %s58
      %p67 = scmp.eq.s32.totalorder %s26, 0
      %p68 = por %p66, %p67
      %p69 = scmp.ne.s32.totalorder %s57, %s58
      %p70 = scmp.eq.s32.totalorder %s27, 1
      %p71 = por %p69, %p70
      %p73 = scmp.ne.s32.totalorder %s58, %s72
      %p74 = scmp.eq.s32.totalorder %s27, 0
      %p75 = por %p73, %p74
      %s77 = sadd.s32 %s76, 1
      %p80 = scmp.eq.s32.totalorder %s21, 1
      %p81 = scmp.ne.s32.totalorder %s76, %s78
      %p82 = scmp.eq.s32.totalorder %s21, 0
      %p83 = por %p81, %p82
      %p84 = scmp.ne.s32.totalorder %s76, %s78
      %p85 = scmp.eq.s32.totalorder %s26, 1
      %p86 = por %p84, %p85
      %p87 = scmp.ne.s32.totalorder %s78, %s79
      %p88 = scmp.eq.s32.totalorder %s26, 0
      %p89 = por %p87, %p88
      %p90 = scmp.ne.s32.totalorder %s78, %s79
      %p91 = scmp.eq.s32.totalorder %s27, 1
      %p92 = por %p90, %p91
      %p94 = scmp.ne.s32.totalorder %s79, %s93
      %p95 = scmp.eq.s32.totalorder %s27, 0
      %p96 = por %p94, %p95
      %s98 = sadd.s32 %s97, 1
      %p101 = scmp.eq.s32.totalorder %s21, 1
      %p102 = scmp.ne.s32.totalorder %s97, %s99
      %p103 = scmp.eq.s32.totalorder %s21, 0
      %p104 = por %p102, %p103
      %p105 = scmp.ne.s32.totalorder %s97, %s99
      %p106 = scmp.eq.s32.totalorder %s26, 1
      %p107 = por %p105, %p106
      %p108 = scmp.ne.s32.totalorder %s99, %s100
      %p109 = scmp.eq.s32.totalorder %s26, 0
      %p110 = por %p108, %p109
      %p111 = scmp.ne.s32.totalorder %s99, %s100
      %p112 = scmp.eq.s32.totalorder %s27, 1
      %p113 = por %p111, %p112
      %p115 = scmp.ne.s32.totalorder %s100, %s114
      %p116 = scmp.eq.s32.totalorder %s27, 0
      %p117 = por %p115, %p116
      %s119 = sadd.s32 %s118, 1
      %p122 = scmp.eq.s32.totalorder %s21, 1
      %p123 = scmp.ne.s32.totalorder %s118, %s120
      %p124 = scmp.eq.s32.totalorder %s21, 0
      %p125 = por %p123, %p124
      %p126 = scmp.ne.s32.totalorder %s118, %s120
      %p127 = scmp.eq.s32.totalorder %s26, 1
      %p128 = por %p126, %p127
      %p129 = scmp.ne.s32.totalorder %s120, %s121
      %p130 = scmp.eq.s32.totalorder %s26, 0
      %p131 = por %p129, %p130
      %p132 = scmp.ne.s32.totalorder %s120, %s121
      %p133 = scmp.eq.s32.totalorder %s27, 1
      %p134 = por %p132, %p133
      %p136 = scmp.ne.s32.totalorder %s121, %s135
      %p137 = scmp.eq.s32.totalorder %s27, 0
      %p138 = por %p136, %p137
      %s140 = sadd.s32 %s139, 1
      %p143 = scmp.eq.s32.totalorder %s21, 1
      %p144 = scmp.ne.s32.totalorder %s139, %s141
      %p145 = scmp.eq.s32.totalorder %s21, 0
      %p146 = por %p144, %p145
      %p147 = scmp.ne.s32.totalorder %s139, %s141
      %p148 = scmp.eq.s32.totalorder %s26, 1
      %p149 = por %p147, %p148
      %p150 = scmp.ne.s32.totalorder %s141, %s142
      %p151 = scmp.eq.s32.totalorder %s26, 0
      %p152 = por %p150, %p151
      %p153 = scmp.ne.s32.totalorder %s141, %s142
      %p154 = scmp.eq.s32.totalorder %s27, 1
      %p155 = por %p153, %p154
      %p157 = scmp.ne.s32.totalorder %s142, %s156
      %p158 = scmp.eq.s32.totalorder %s27, 0
      %p159 = por %p157, %p158
      %s161 = sadd.s32 %s160, 1
      %p164 = scmp.eq.s32.totalorder %s21, 1
      %p165 = scmp.ne.s32.totalorder %s160, %s162
      %p166 = scmp.eq.s32.totalorder %s21, 0
      %p167 = por %p165, %p166
      %p168 = scmp.ne.s32.totalorder %s160, %s162
      %p169 = scmp.eq.s32.totalorder %s26, 1
      %p170 = por %p168, %p169
      %p171 = scmp.ne.s32.totalorder %s162, %s163
      %p172 = scmp.eq.s32.totalorder %s26, 0
      %p173 = por %p171, %p172
      %p174 = scmp.ne.s32.totalorder %s162, %s163
      %p175 = scmp.eq.s32.totalorder %s27, 1
      %p176 = por %p174, %p175
      %p178 = scmp.ne.s32.totalorder %s163, %s177
      %p179 = scmp.eq.s32.totalorder %s27, 0
      %p180 = por %p178, %p179
      %s181 = ssub.s32 %s21, %s28
      %p182 = scmp.eq.s32.totalorder %s181, 0
      %s184 = sadd.s32 %s183, 1
      %s185 = scalar_select %p182, %s183, %s184
      %p188 = pneg %p182
      %p189 = scmp.eq.s32.totalorder %s21, 1
      %p190 = por %p188, %p189
      %p191 = scmp.ne.s32.totalorder %s183, %s186
      %p192 = scmp.eq.s32.totalorder %s21, 0
      %p193 = por %p191, %p192
      %p194 = scmp.ne.s32.totalorder %s183, %s186
      %p195 = scmp.eq.s32.totalorder %s26, 1
      %p196 = por %p194, %p195
      %p197 = scmp.ne.s32.totalorder %s186, %s187
      %p198 = scmp.eq.s32.totalorder %s26, 0
      %p199 = por %p197, %p198
      %p200 = scmp.ne.s32.totalorder %s186, %s187
      %p201 = scmp.eq.s32.totalorder %s27, 1
      %p202 = por %p200, %p201
      %p204 = scmp.ne.s32.totalorder %s187, %s203
      %p205 = scmp.eq.s32.totalorder %s27, 0
      %p206 = por %p204, %p205
      %p207 = scmp.le.s32.totalorder 1, %s21
      %p208 = scmp.lt.s32.totalorder %s21, 3
      %p209 = pnand %p207, %p208
      %p210 = pneg %p209
      // Predicated region
      $region9: #{tpu_custom_call.1} parent=5 // pred_check
        _
      $region10: #{tpu_custom_call.1} parent=5 // pred_check_branch
        %212 = sbr.rel (%p209) target = $region12
      $region11: #{tpu_custom_call.1} parent=5 // pred_region
        %s213 = ssub.s32 %s21, 1
        // Predicated region
        $region13: #{tpu_custom_call.1} parent=11 // pred_check
          %p214 = pneg %p68
        $region14: #{tpu_custom_call.1} parent=11 // pred_check_branch
          %216 = sbr.rel (%p214) target = $region16
        $region15: #{tpu_custom_call.1} parent=11 // pred_region
          %s218 = ssub.s32 1024, 1024
          %219 = vsyncadd [#allocation6], %s218
          %s220 = sshll.u32 [#allocation5], 4
          %s221 = int_to_ptr.vmem [resolvable:$true] %s220
          %226 = dma.hbm_to_vmem [thread:$0]  %s1, 1024, %s221, [#allocation6], 64, 64, 4
        $region16: #{tpu_custom_call.1} parent=11 // pred_fallthru
          _
        // Predicated region
        $region17: #{tpu_custom_call.1} parent=11 // pred_check
          %p227 = pneg %p89
        $region18: #{tpu_custom_call.1} parent=11 // pred_check_branch
          %229 = sbr.rel (%p227) target = $region20
        $region19: #{tpu_custom_call.1} parent=11 // pred_region
          _
        $region20: #{tpu_custom_call.1} parent=11 // pred_fallthru
          _
        // Predicated region
        $region21: #{tpu_custom_call.1} parent=11 // pred_check
          %p230 = pneg %p110
        $region22: #{tpu_custom_call.1} parent=11 // pred_check_branch
          %232 = sbr.rel (%p230) target = $region24
        $region23: #{tpu_custom_call.1} parent=11 // pred_region
          %s234 = ssub.s32 1024, 1024
          %235 = vsyncadd [#allocation6], %s234
          %s236 = sshll.u32 [#allocation7], 4
          %s237 = int_to_ptr.vmem [resolvable:$true] %s236
          %242 = dma.hbm_to_vmem [thread:$0]  %s3, 1024, %s237, [#allocation6], 64, 64, 4
        $region24: #{tpu_custom_call.1} parent=11 // pred_fallthru
          _
        // Predicated region
        $region25: #{tpu_custom_call.1} parent=11 // pred_check
          %p243 = pneg %p131
        $region26: #{tpu_custom_call.1} parent=11 // pred_check_branch
          %245 = sbr.rel (%p243) target = $region28
        $region27: #{tpu_custom_call.1} parent=11 // pred_region
          _
        $region28: #{tpu_custom_call.1} parent=11 // pred_fallthru
          _
        // Predicated region
        $region29: #{tpu_custom_call.1} parent=11 // pred_check
          %p246 = pneg %p152
        $region30: #{tpu_custom_call.1} parent=11 // pred_check_branch
          %248 = sbr.rel (%p246) target = $region32
        $region31: #{tpu_custom_call.1} parent=11 // pred_region
          %s250 = ssub.s32 1024, 1024
          %251 = vsyncadd [#allocation9], %s250
          %s252 = sshll.u32 [#allocation8], 4
          %s253 = int_to_ptr.vmem [resolvable:$true] %s252
          %258 = dma.hbm_to_vmem [thread:$0]  %s5, 1024, %s253, [#allocation9], 64, 64, 4
        $region32: #{tpu_custom_call.1} parent=11 // pred_fallthru
          _
        // Predicated region
        $region33: #{tpu_custom_call.1} parent=11 // pred_check
          %p259 = pneg %p173
        $region34: #{tpu_custom_call.1} parent=11 // pred_check_branch
          %261 = sbr.rel (%p259) target = $region36
        $region35: #{tpu_custom_call.1} parent=11 // pred_region
          _
        $region36: #{tpu_custom_call.1} parent=11 // pred_fallthru
          _
      $region12: #{tpu_custom_call.1} parent=5 // pred_fallthru
        _
      %p262 = scmp.lt.s32.totalorder %s21, 2
      // Predicated region
      $region37: #{tpu_custom_call.1} parent=5 // pred_check
        %p263 = pneg %p262
      $region38: #{tpu_custom_call.1} parent=5 // pred_check_branch
        %265 = sbr.rel (%p263) target = $region40
      $region39: #{tpu_custom_call.1} parent=5 // pred_region
        // Predicated region
        $region41: #{tpu_custom_call.1} parent=39 // pred_check
          %p266 = pneg %p41
        $region42: #{tpu_custom_call.1} parent=39 // pred_check_branch
          %268 = sbr.rel (%p266) target = $region44
        $region43: #{tpu_custom_call.1} parent=39 // pred_region
          %s269 = sand.u32 %s31, 1
          %s270 = scalar_lea.sflag [#allocation3], %s269
          %s271 = sand.u32 %s31, 1
          %s272 = smul.addr %s271, 8
          %s273 = scalar_lea.vmem [#allocation2], %s272
          %s274 = smul.u32 2, %s21
          %s276 = ssub.s32 128, 128
          %277 = vsyncadd %s270, %s276
          %s278 = smul.addr %s274, 64
          %s279 = scalar_lea.hbm %s0, %s278
          %s280 = sshll.u32 %s273, 4
          %s281 = int_to_ptr.vmem [resolvable:$true] %s280
          %286 = dma.hbm_to_vmem [thread:$0]  %s279, 128, %s281, %s270, 64, 64, 4
        $region44: #{tpu_custom_call.1} parent=39 // pred_fallthru
          _
      $region40: #{tpu_custom_call.1} parent=5 // pred_fallthru
        _
      %p287 = scmp.le.s32.totalorder 1, %s21
      %p288 = scmp.lt.s32.totalorder %s21, 3
      %p289 = pnand %p287, %p288
      %p290 = pneg %p289
      // Predicated region
      $region45: #{tpu_custom_call.1} parent=5 // pred_check
        _
      $region46: #{tpu_custom_call.1} parent=5 // pred_check_branch
        %292 = sbr.rel (%p289) target = $region48
      $region47: #{tpu_custom_call.1} parent=5 // pred_region
        %s293 = ssub.s32 %s21, 1
        %s294 = sand.u32 %s34, 1
        %s295 = scalar_lea.sflag [#allocation3], %s294
        %s296 = sand.u32 %s34, 1
        %s297 = smul.addr %s296, 8
        %s298 = scalar_lea.vmem [#allocation2], %s297
        // Predicated region
        $region49: #{tpu_custom_call.1} parent=47 // pred_check
          %p299 = pneg %p47
        $region50: #{tpu_custom_call.1} parent=47 // pred_check_branch
          %301 = sbr.rel (%p299) target = $region52
        $region51: #{tpu_custom_call.1} parent=47 // pred_region
          %302 = dma.done %s295, 128
        $region52: #{tpu_custom_call.1} parent=47 // pred_fallthru
          _
        // Predicated region
        $region53: #{tpu_custom_call.1} parent=47 // pred_check
          %p303 = pneg %p68
        $region54: #{tpu_custom_call.1} parent=47 // pred_check_branch
          %305 = sbr.rel (%p303) target = $region56
        $region55: #{tpu_custom_call.1} parent=47 // pred_region
          %306 = dma.done [#allocation6], 1024
        $region56: #{tpu_custom_call.1} parent=47 // pred_fallthru
          _
        // Predicated region
        $region57: #{tpu_custom_call.1} parent=47 // pred_check
          %p307 = pneg %p110
        $region58: #{tpu_custom_call.1} parent=47 // pred_check_branch
          %309 = sbr.rel (%p307) target = $region60
        $region59: #{tpu_custom_call.1} parent=47 // pred_region
          %310 = dma.done [#allocation6], 1024
        $region60: #{tpu_custom_call.1} parent=47 // pred_fallthru
          _
        // Predicated region
        $region61: #{tpu_custom_call.1} parent=47 // pred_check
          %p311 = pneg %p152
        $region62: #{tpu_custom_call.1} parent=47 // pred_check_branch
          %313 = sbr.rel (%p311) target = $region64
        $region63: #{tpu_custom_call.1} parent=47 // pred_region
          %314 = dma.done [#allocation9], 1024
        $region64: #{tpu_custom_call.1} parent=47 // pred_fallthru
          _
        %s315 = sand.u32 %s34, 1
        %s316 = scalar_lea.sflag [#allocation3], %s315
        %s317 = sand.u32 %s34, 1
        %s318 = smul.addr %s317, 8
        %s319 = scalar_lea.vmem [#allocation2], %s318
        %p320 = pneg %p47
        %p321 = pneg %p44
        %p322 = pneg %p68
        %p323 = pneg %p65
        %p324 = pneg %p89
        %p325 = pneg %p86
        %p326 = pneg %p110
        %p327 = pneg %p107
        %p328 = pneg %p131
        %p329 = pneg %p128
        %p330 = pneg %p152
        %p331 = pneg %p149
        %p332 = pneg %p173
        %p333 = pneg %p170
        %p334 = pneg %p199
        %p335 = pneg %p196
        %s336 = sand.u32 %s186, 1
        %s337 = scalar_lea.sflag [#allocation4], %s336
        %s338 = sand.u32 %s186, 1
        %s339 = smul.addr %s338, 16
        %s340 = scalar_lea.vmem [#allocation10], %s339
        %s341 = smul.u32 2, %s26
        %s342 = smul.u32 2, %s26
        %v344 = vld [vmem:[%s298] sm:$0xf]
        %v345 = vld [vmem:[%s298 + $0x4] sm:$0xf]
        %v346 = vld [vmem:[#allocation5] sm:$0xf]
        %v347 = vld [vmem:[#allocation5 + $0x4] sm:$0xf]
        %v348 = vld [vmem:[#allocation5 + $0x8] sm:$0xf]
        %v349 = vld [vmem:[#allocation5 + $0xc] sm:$0xf]
        %v350 = vld [vmem:[#allocation5 + $0x10] sm:$0xf]
        %v351 = vld [vmem:[#allocation5 + $0x14] sm:$0xf]
        %v352 = vld [vmem:[#allocation5 + $0x18] sm:$0xf]
        %v353 = vld [vmem:[#allocation5 + $0x1c] sm:$0xf]
        %v354 = vld [vmem:[#allocation5 + $0x20] sm:$0xf]
        %v355 = vld [vmem:[#allocation5 + $0x24] sm:$0xf]
        %v356 = vld [vmem:[#allocation5 + $0x28] sm:$0xf]
        %v357 = vld [vmem:[#allocation5 + $0x2c] sm:$0xf]
        %v358 = vld [vmem:[#allocation5 + $0x30] sm:$0xf]
        %v359 = vld [vmem:[#allocation5 + $0x34] sm:$0xf]
        %v360 = vld [vmem:[#allocation5 + $0x38] sm:$0xf]
        %v361 = vld [vmem:[#allocation5 + $0x3c] sm:$0xf]
        %v362 = vld [vmem:[%s2] sm:$0x1]
        %v364 = vlaneseq
        %v365 = vshrl.u32 %v364, 7
        %v366 = vsub.s32 0, %v365
        %v367 = vrot.slane %v362, %v366
        %v371 = vunpack.c.l.b16 %v344
        %v372 = vunpack.c.l.b16 %v345
        %v373 = vpack.c.b16 %v372, %v371
        %v391 = vunpack.c.l.b16 %v346
        %v392 = vunpack.c.l.b16 %v347
        %v393 = vunpack.c.l.b16 %v348
        %v394 = vunpack.c.l.b16 %v349
        %v395 = vunpack.c.l.b16 %v350
        %v396 = vunpack.c.l.b16 %v351
        %v397 = vunpack.c.l.b16 %v352
        %v398 = vunpack.c.l.b16 %v353
        %v399 = vunpack.c.l.b16 %v354
        %v400 = vunpack.c.l.b16 %v355
        %v401 = vunpack.c.l.b16 %v356
        %v402 = vunpack.c.l.b16 %v357
        %v403 = vunpack.c.l.b16 %v358
        %v404 = vunpack.c.l.b16 %v359
        %v405 = vunpack.c.l.b16 %v360
        %v406 = vunpack.c.l.b16 %v361
        %v407 = vpack.c.b16 %v392, %v391
        %v408 = vpack.c.b16 %v394, %v393
        %v409 = vpack.c.b16 %v396, %v395
        %v410 = vpack.c.b16 %v398, %v397
        %v411 = vpack.c.b16 %v400, %v399
        %v412 = vpack.c.b16 %v402, %v401
        %v413 = vpack.c.b16 %v404, %v403
        %v414 = vpack.c.b16 %v406, %v405
        %423 = vmatprep.subr.bf16.mxu0 0
        %424 = vmatpush1.bf16.msra.mxu0 %v407
        %425 = vmatprep.subr.bf16.mxu0 0
        %426 = vmatpush1.bf16.msra.mxu0 %v408
        %427 = vmatprep.subr.bf16.mxu0 0
        %428 = vmatpush1.bf16.msra.mxu0 %v409
        %429 = vmatprep.subr.bf16.mxu0 0
        %430 = vmatpush1.bf16.msra.mxu0 %v410
        %431 = vmatprep.subr.bf16.mxu0 0
        %432 = vmatpush1.bf16.msra.mxu0 %v411
        %433 = vmatprep.subr.bf16.mxu0 0
        %434 = vmatpush1.bf16.msra.mxu0 %v412
        %435 = vmatprep.subr.bf16.mxu0 0
        %436 = vmatpush1.bf16.msra.mxu0 %v413
        %437 = vmatprep.subr.bf16.mxu0 0
        %438 = vmatpush1.bf16.msra.mxu0 %v414
        %439 = vmatprep.subr.bf16.mxu0 0
        %440 = vmatpush1.bf16.msra.mxu0 0
        %441 = vmatprep.subr.bf16.mxu0 0
        %442 = vmatpush1.bf16.msra.mxu0 0
        %443 = vmatprep.subr.bf16.mxu0 0
        %444 = vmatpush1.bf16.msra.mxu0 0
        %445 = vmatprep.subr.bf16.mxu0 0
        %446 = vmatpush1.bf16.msra.mxu0 0
        %447 = vmatprep.subr.bf16.mxu0 0
        %448 = vmatpush1.bf16.msra.mxu0 0
        %449 = vmatprep.subr.bf16.mxu0 0
        %450 = vmatpush1.bf16.msra.mxu0 0
        %451 = vmatprep.subr.bf16.mxu0 0
        %452 = vmatpush1.bf16.msra.mxu0 0
        %453 = vmatprep.subr.bf16.mxu0 0
        %454 = vmatpush1.bf16.msra.mxu0 0
        %455 = vmatprep.mubr.bf16.mxu0 0
        %456 = vmatmul.mubr.bf16.gmra.mrb[0].mxu0 %v373
        %v457 = vpop.f32.mrb[0].mxu0
        %v458 = vadd.f32 %v367, %v457
        %v459 = vpop.f32.mrb[0].mxu0
        %v460 = vpop.f32.mrb[0].mxu0
        %v461 = vadd.f32 %v367, %v460
        %v462 = vpop.f32.mrb[0].mxu0
        %463 = vdwg.mxu0
        %v464 = vmul.f32 %v458, 0.5
        %v465 = vmul.f32 %v461, 0.5
        %v466 = vtanh.pop %v464
        %v467 = vtanh.pop %v465
        %v468 = vmul.f32 %v466, 0.5
        %v469 = vmul.f32 %v467, 0.5
        %v470 = vadd.f32 %v468, 0.5
        %v471 = vadd.f32 %v469, 0.5
        %v472 = vld [vmem:[#allocation7] sm:$0xf]
        %v473 = vld [vmem:[#allocation7 + $0x4] sm:$0xf]
        %v474 = vld [vmem:[#allocation7 + $0x8] sm:$0xf]
        %v475 = vld [vmem:[#allocation7 + $0xc] sm:$0xf]
        %v476 = vld [vmem:[#allocation7 + $0x10] sm:$0xf]
        %v477 = vld [vmem:[#allocation7 + $0x14] sm:$0xf]
        %v478 = vld [vmem:[#allocation7 + $0x18] sm:$0xf]
        %v479 = vld [vmem:[#allocation7 + $0x1c] sm:$0xf]
        %v480 = vld [vmem:[#allocation7 + $0x20] sm:$0xf]
        %v481 = vld [vmem:[#allocation7 + $0x24] sm:$0xf]
        %v482 = vld [vmem:[#allocation7 + $0x28] sm:$0xf]
        %v483 = vld [vmem:[#allocation7 + $0x2c] sm:$0xf]
        %v484 = vld [vmem:[#allocation7 + $0x30] sm:$0xf]
        %v485 = vld [vmem:[#allocation7 + $0x34] sm:$0xf]
        %v486 = vld [vmem:[#allocation7 + $0x38] sm:$0xf]
        %v487 = vld [vmem:[#allocation7 + $0x3c] sm:$0xf]
        %v488 = vld [vmem:[%s4] sm:$0x1]
        %v489 = vpack.c.bf16 %v471, %v470
        %v491 = vlaneseq
        %v492 = vshrl.u32 %v491, 7
        %v493 = vsub.s32 0, %v492
        %v494 = vrot.slane %v488, %v493
        %v512 = vunpack.c.l.b16 %v472
        %v513 = vunpack.c.l.b16 %v473
        %v514 = vunpack.c.l.b16 %v474
        %v515 = vunpack.c.l.b16 %v475
        %v516 = vunpack.c.l.b16 %v476
        %v517 = vunpack.c.l.b16 %v477
        %v518 = vunpack.c.l.b16 %v478
        %v519 = vunpack.c.l.b16 %v479
        %v520 = vunpack.c.l.b16 %v480
        %v521 = vunpack.c.l.b16 %v481
        %v522 = vunpack.c.l.b16 %v482
        %v523 = vunpack.c.l.b16 %v483
        %v524 = vunpack.c.l.b16 %v484
        %v525 = vunpack.c.l.b16 %v485
        %v526 = vunpack.c.l.b16 %v486
        %v527 = vunpack.c.l.b16 %v487
        %v528 = vpack.c.b16 %v513, %v512
        %v529 = vpack.c.b16 %v515, %v514
        %v530 = vpack.c.b16 %v517, %v516
        %v531 = vpack.c.b16 %v519, %v518
        %v532 = vpack.c.b16 %v521, %v520
        %v533 = vpack.c.b16 %v523, %v522
        %v534 = vpack.c.b16 %v525, %v524
        %v535 = vpack.c.b16 %v527, %v526
        %544 = vmatprep.subr.bf16.mxu0 0
        %545 = vmatpush1.bf16.msra.mxu0 %v528
        %546 = vmatprep.subr.bf16.mxu0 0
        %547 = vmatpush1.bf16.msra.mxu0 %v529
        %548 = vmatprep.subr.bf16.mxu0 0
        %549 = vmatpush1.bf16.msra.mxu0 %v530
        %550 = vmatprep.subr.bf16.mxu0 0
        %551 = vmatpush1.bf16.msra.mxu0 %v531
        %552 = vmatprep.subr.bf16.mxu0 0
        %553 = vmatpush1.bf16.msra.mxu0 %v532
        %554 = vmatprep.subr.bf16.mxu0 0
        %555 = vmatpush1.bf16.msra.mxu0 %v533
        %556 = vmatprep.subr.bf16.mxu0 0
        %557 = vmatpush1.bf16.msra.mxu0 %v534
        %558 = vmatprep.subr.bf16.mxu0 0
        %559 = vmatpush1.bf16.msra.mxu0 %v535
        %560 = vmatprep.subr.bf16.mxu0 0
        %561 = vmatpush1.bf16.msra.mxu0 0
        %562 = vmatprep.subr.bf16.mxu0 0
        %563 = vmatpush1.bf16.msra.mxu0 0
        %564 = vmatprep.subr.bf16.mxu0 0
        %565 = vmatpush1.bf16.msra.mxu0 0
        %566 = vmatprep.subr.bf16.mxu0 0
        %567 = vmatpush1.bf16.msra.mxu0 0
        %568 = vmatprep.subr.bf16.mxu0 0
        %569 = vmatpush1.bf16.msra.mxu0 0
        %570 = vmatprep.subr.bf16.mxu0 0
        %571 = vmatpush1.bf16.msra.mxu0 0
        %572 = vmatprep.subr.bf16.mxu0 0
        %573 = vmatpush1.bf16.msra.mxu0 0
        %574 = vmatprep.subr.bf16.mxu0 0
        %575 = vmatpush1.bf16.msra.mxu0 0
        %576 = vmatprep.mubr.bf16.mxu0 0
        %577 = vmatmul.mubr.bf16.gmra.mrb[0].mxu0 %v489
        %v578 = vpop.f32.mrb[0].mxu0
        %v579 = vadd.f32 %v494, %v578
        %v580 = vpop.f32.mrb[0].mxu0
        %v581 = vpop.f32.mrb[0].mxu0
        %v582 = vadd.f32 %v494, %v581
        %v583 = vpop.f32.mrb[0].mxu0
        %584 = vdwg.mxu0
        %v585 = vtanh.pop %v579
        %v586 = vtanh.pop %v582
        %v587 = vld [vmem:[#allocation8] sm:$0xf]
        %v588 = vld [vmem:[#allocation8 + $0x4] sm:$0xf]
        %v589 = vld [vmem:[#allocation8 + $0x8] sm:$0xf]
        %v590 = vld [vmem:[#allocation8 + $0xc] sm:$0xf]
        %v591 = vld [vmem:[#allocation8 + $0x10] sm:$0xf]
        %v592 = vld [vmem:[#allocation8 + $0x14] sm:$0xf]
        %v593 = vld [vmem:[#allocation8 + $0x18] sm:$0xf]
        %v594 = vld [vmem:[#allocation8 + $0x1c] sm:$0xf]
        %v595 = vld [vmem:[#allocation8 + $0x20] sm:$0xf]
        %v596 = vld [vmem:[#allocation8 + $0x24] sm:$0xf]
        %v597 = vld [vmem:[#allocation8 + $0x28] sm:$0xf]
        %v598 = vld [vmem:[#allocation8 + $0x2c] sm:$0xf]
        %v599 = vld [vmem:[#allocation8 + $0x30] sm:$0xf]
        %v600 = vld [vmem:[#allocation8 + $0x34] sm:$0xf]
        %v601 = vld [vmem:[#allocation8 + $0x38] sm:$0xf]
        %v602 = vld [vmem:[#allocation8 + $0x3c] sm:$0xf]
        %v603 = vld [vmem:[%s6] sm:$0x1]
        %v604 = vpack.c.bf16 %v586, %v585
        %v606 = vlaneseq
        %v607 = vshrl.u32 %v606, 7
        %v608 = vsub.s32 0, %v607
        %v609 = vrot.slane %v603, %v608
        %v627 = vunpack.c.l.b16 %v587
        %v628 = vunpack.c.l.b16 %v588
        %v629 = vunpack.c.l.b16 %v589
        %v630 = vunpack.c.l.b16 %v590
        %v631 = vunpack.c.l.b16 %v591
        %v632 = vunpack.c.l.b16 %v592
        %v633 = vunpack.c.l.b16 %v593
        %v634 = vunpack.c.l.b16 %v594
        %v635 = vunpack.c.l.b16 %v595
        %v636 = vunpack.c.l.b16 %v596
        %v637 = vunpack.c.l.b16 %v597
        %v638 = vunpack.c.l.b16 %v598
        %v639 = vunpack.c.l.b16 %v599
        %v640 = vunpack.c.l.b16 %v600
        %v641 = vunpack.c.l.b16 %v601
        %v642 = vunpack.c.l.b16 %v602
        %v643 = vpack.c.b16 %v628, %v627
        %v644 = vpack.c.b16 %v630, %v629
        %v645 = vpack.c.b16 %v632, %v631
        %v646 = vpack.c.b16 %v634, %v633
        %v647 = vpack.c.b16 %v636, %v635
        %v648 = vpack.c.b16 %v638, %v637
        %v649 = vpack.c.b16 %v640, %v639
        %v650 = vpack.c.b16 %v642, %v641
        %659 = vmatprep.subr.bf16.mxu0 0
        %660 = vmatpush1.bf16.msra.mxu0 %v643
        %661 = vmatprep.subr.bf16.mxu0 0
        %662 = vmatpush1.bf16.msra.mxu0 %v644
        %663 = vmatprep.subr.bf16.mxu0 0
        %664 = vmatpush1.bf16.msra.mxu0 %v645
        %665 = vmatprep.subr.bf16.mxu0 0
        %666 = vmatpush1.bf16.msra.mxu0 %v646
        %667 = vmatprep.subr.bf16.mxu0 0
        %668 = vmatpush1.bf16.msra.mxu0 %v647
        %669 = vmatprep.subr.bf16.mxu0 0
        %670 = vmatpush1.bf16.msra.mxu0 %v648
        %671 = vmatprep.subr.bf16.mxu0 0
        %672 = vmatpush1.bf16.msra.mxu0 %v649
        %673 = vmatprep.subr.bf16.mxu0 0
        %674 = vmatpush1.bf16.msra.mxu0 %v650
        %675 = vmatprep.subr.bf16.mxu0 0
        %676 = vmatpush1.bf16.msra.mxu0 0
        %677 = vmatprep.subr.bf16.mxu0 0
        %678 = vmatpush1.bf16.msra.mxu0 0
        %679 = vmatprep.subr.bf16.mxu0 0
        %680 = vmatpush1.bf16.msra.mxu0 0
        %681 = vmatprep.subr.bf16.mxu0 0
        %682 = vmatpush1.bf16.msra.mxu0 0
        %683 = vmatprep.subr.bf16.mxu0 0
        %684 = vmatpush1.bf16.msra.mxu0 0
        %685 = vmatprep.subr.bf16.mxu0 0
        %686 = vmatpush1.bf16.msra.mxu0 0
        %687 = vmatprep.subr.bf16.mxu0 0
        %688 = vmatpush1.bf16.msra.mxu0 0
        %689 = vmatprep.subr.bf16.mxu0 0
        %690 = vmatpush1.bf16.msra.mxu0 0
        %691 = vmatprep.mubr.bf16.mxu0 0
        %692 = vmatmul.mubr.bf16.gmra.mrb[0].mxu0 %v604
        %v693 = vpop.f32.mrb[0].mxu0
        %v694 = vadd.f32 %v609, %v693
        %v695 = vpop.f32.mrb[0].mxu0
        %v696 = vpop.f32.mrb[0].mxu0
        %v697 = vadd.f32 %v609, %v696
        %v698 = vpop.f32.mrb[0].mxu0
        %699 = vdwg.mxu0
        %700 = vst [vmem:[%s340] sm:$0xff] %v694
        %701 = vst [vmem:[%s340 + $0x8] sm:$0xff] %v697
        %s702 = sand.u32 %s186, 1
        %s703 = scalar_lea.sflag [#allocation4], %s702
        %s704 = sand.u32 %s186, 1
        %s705 = smul.addr %s704, 16
        %s706 = scalar_lea.vmem [#allocation10], %s705
        // Predicated region
        $region65: #{tpu_custom_call.1} parent=47 // pred_check
          %p707 = pneg %p196
        $region66: #{tpu_custom_call.1} parent=47 // pred_check_branch
          %709 = sbr.rel (%p707) target = $region68
        $region67: #{tpu_custom_call.1} parent=47 // pred_region
          %s710 = smul.u32 2, %s26
          %s712 = ssub.s32 256, 256
          %713 = vsyncadd %s703, %s712
          %s714 = smul.addr %s710, 128
          %s715 = scalar_lea.hbm %s7, %s714
          %s716 = sshll.u32 %s706, 4
          %s717 = int_to_ptr.vmem [resolvable:$true] %s716
          %722 = dma.vmem_to_hbm [thread:$0]  %s717, 256, %s715, %s703, 128, 128, 8
        $region68: #{tpu_custom_call.1} parent=47 // pred_fallthru
          _
      $region48: #{tpu_custom_call.1} parent=5 // pred_fallthru
        _
      %p723 = scmp.le.s32.totalorder 2, %s21
      // Predicated region
      $region69: #{tpu_custom_call.1} parent=5 // pred_check
        %p724 = pneg %p723
      $region70: #{tpu_custom_call.1} parent=5 // pred_check_branch
        %726 = sbr.rel (%p724) target = $region72
      $region71: #{tpu_custom_call.1} parent=5 // pred_region
        %s727 = ssub.s32 %s21, 2
        // Predicated region
        $region73: #{tpu_custom_call.1} parent=71 // pred_check
          %p728 = pneg %p202
        $region74: #{tpu_custom_call.1} parent=71 // pred_check_branch
          %730 = sbr.rel (%p728) target = $region76
        $region75: #{tpu_custom_call.1} parent=71 // pred_region
          %s731 = sand.u32 %s187, 1
          %s732 = scalar_lea.sflag [#allocation4], %s731
          %s733 = sand.u32 %s187, 1
          %s734 = smul.addr %s733, 16
          %s735 = scalar_lea.vmem [#allocation10], %s734
          %736 = dma.done %s732, 256
        $region76: #{tpu_custom_call.1} parent=71 // pred_fallthru
          _
      $region72: #{tpu_custom_call.1} parent=5 // pred_fallthru
        _
    $region6: #{tpu_custom_call.1} parent=1 // loop_footer
      %s25 = sadd.s32 1, %s21
    $region7: #{tpu_custom_call.1} parent=1 // loop_footer_branch
      %20 = sbr.rel target = $region3
    $region8: #{tpu_custom_call.1} parent=1 // loop_exit
      _
    %737 = vsyncpa [#allocation3], 1
    %s738 = scalar_lea.sflag [#allocation3], 1
    %739 = vsyncpa %s738, 1
    %740 = vsyncpa [#allocation6], 1
    %741 = vsyncpa [#allocation9], 1
    %742 = vsyncpa [#allocation4], 1
    %s743 = scalar_lea.sflag [#allocation4], 1
    %744 = vsyncpa %s743, 1

// kernel: tpu_custom_call.1
$region0: #{tpu_custom_call.1}
  #allocation0 [shape = 'u32[]', space=smem, size = 0x4, offset = 0x4, fixed_abs, tag = 'smem constant byte address 0x4 - core index']
  #allocation1 [shape = 'u32[144,128]{1,0:T(1,128)}', space=vmem, size = 0x12000, scoped, tag = 'internal scratch']
  %s0 = inlined_call_operand.hbm [shape: bf16[32,128], index: 0, kind: input, shape index: {}]
  %s1 = inlined_call_operand.hbm [shape: bf16[128,128], index: 1, kind: input, shape index: {}]
  %s2 = inlined_call_operand.vmem [shape: f32[1,128], index: 2, kind: input, shape index: {}]
  %s3 = inlined_call_operand.hbm [shape: bf16[128,128], index: 3, kind: input, shape index: {}]
  %s4 = inlined_call_operand.vmem [shape: f32[1,128], index: 4, kind: input, shape index: {}]
  %s5 = inlined_call_operand.hbm [shape: bf16[128,128], index: 5, kind: input, shape index: {}]
  %s6 = inlined_call_operand.vmem [shape: f32[1,128], index: 6, kind: input, shape index: {}]
  %s7 = inlined_call_operand.hbm [shape: f32[32,128], index: 7, kind: output, shape index: {}]
  %s8 = sld [smem:[#allocation0]]
  $region77: #{tpu_custom_call.1} parent=0
    _
  %s10 = ssub.s32 1, %s8
  %s11 = scalar_select 0, %s10, %s8
  $region1: #{tpu_custom_call.1} parent=0
    #allocation2 [shape = 'u8[8192]{0}', space=vmem, size = 0x2000, scoped, tag = 'input window, operand 0']
    #allocation3 [shape = 's32[2]{0}', space=sflag, size = 0x8, scoped, tag = 'scoped memory for tpu_custom_call.1']
    #allocation4 [shape = 's32[2]{0}', space=sflag, size = 0x8, scoped, tag = 'scoped memory for tpu_custom_call.1']
    #allocation5 [shape = 'u8[32768]{0}', space=vmem, size = 0x8000, scoped, tag = 'input window, operand 1, single buffered']
    #allocation6 [shape = 's32[1]{0}', space=sflag, size = 0x4, scoped, tag = 'scoped memory for tpu_custom_call.1']
    #allocation7 [shape = 'u8[32768]{0}', space=vmem, size = 0x8000, scoped, tag = 'input window, operand 3, single buffered']
    #allocation8 [shape = 'u8[32768]{0}', space=vmem, size = 0x8000, scoped, tag = 'input window, operand 5, single buffered']
    #allocation9 [shape = 's32[1]{0}', space=sflag, size = 0x4, scoped, tag = 'scoped memory for tpu_custom_call.1']
    #allocation10 [shape = 'u8[16384]{0}', space=vmem, size = 0x4000, scoped, tag = 'output window, operand 0']
    %12 = vsyncpa [#allocation3], 0
    %s13 = scalar_lea.sflag [#allocation3], 1
    %14 = vsyncpa %s13, 0
    %15 = vsyncpa [#allocation6], 0
    %16 = vsyncpa [#allocation9], 0
    %17 = vsyncpa [#allocation4], 0
    %s18 = scalar_lea.sflag [#allocation4], 1
    %19 = vsyncpa %s18, 0
    loop: start=0, step=1, limit=4
    $region2: #{tpu_custom_call.1} parent=1 // loop_pre_header
      _
    $region3: #{tpu_custom_call.1} parent=1 // loop_header
      %s21 = sphi 0, %s25
      %p22 = scmp.ge.s32.totalorder %s21, 4
      %s31 = sphi 0, %s33
      %s34 = sphi 0, %s31
      %s35 = sphi 0, %s34
      %s51 = sphi 0, %s35
      %s55 = sphi 0, %s55
      %s57 = sphi 0, %s55
      %s58 = sphi 0, %s57
      %s72 = sphi 0, %s58
      %s76 = sphi 0, %s76
      %s78 = sphi 0, %s76
      %s79 = sphi 0, %s78
      %s93 = sphi 0, %s79
      %s97 = sphi 0, %s97
      %s99 = sphi 0, %s97
      %s100 = sphi 0, %s99
      %s114 = sphi 0, %s100
      %s118 = sphi 0, %s118
      %s120 = sphi 0, %s118
      %s121 = sphi 0, %s120
      %s135 = sphi 0, %s121
      %s139 = sphi 0, %s139
      %s141 = sphi 0, %s139
      %s142 = sphi 0, %s141
      %s156 = sphi 0, %s142
      %s160 = sphi 0, %s160
      %s162 = sphi 0, %s160
      %s163 = sphi 0, %s162
      %s177 = sphi 0, %s163
      %s183 = sphi 0, %s185
      %s186 = sphi 0, %s183
      %s187 = sphi 0, %s186
      %s203 = sphi 0, %s187
    $region4: #{tpu_custom_call.1} parent=1 // loop_header_branch
      %24 = sbr.rel (%p22) target = $region8
    $region5: #{tpu_custom_call.1} parent=1 // loop_body
      %s26 = ssub.s32 %s21, 1
      %s27 = ssub.s32 %s21, 2
      %s28 = sadd.s32 %s21, 1
      %s29 = ssub.s32 %s21, %s28
      %p30 = scmp.eq.s32.totalorder %s29, 0
      %s32 = sadd.s32 %s31, 1
      %s33 = scalar_select %p30, %s31, %s32
      %p36 = pneg %p30
      %p37 = scmp.eq.s32.totalorder %s21, 1
      %p38 = por %p36, %p37
      %p39 = scmp.ne.s32.totalorder %s31, %s34
      %p40 = scmp.eq.s32.totalorder %s21, 0
      %p41 = por %p39, %p40
      %p42 = scmp.ne.s32.totalorder %s31, %s34
      %p43 = scmp.eq.s32.totalorder %s26, 1
      %p44 = por %p42, %p43
      %p45 = scmp.ne.s32.totalorder %s34, %s35
      %p46 = scmp.eq.s32.totalorder %s26, 0
      %p47 = por %p45, %p46
      %p48 = scmp.ne.s32.totalorder %s34, %s35
      %p49 = scmp.eq.s32.totalorder %s27, 1
      %p50 = por %p48, %p49
      %p52 = scmp.ne.s32.totalorder %s35, %s51
      %p53 = scmp.eq.s32.totalorder %s27, 0
      %p54 = por %p52, %p53
      %s56 = sadd.s32 %s55, 1
      %p59 = scmp.eq.s32.totalorder %s21, 1
      %p60 = scmp.ne.s32.totalorder %s55, %s57
      %p61 = scmp.eq.s32.totalorder %s21, 0
      %p62 = por %p60, %p61
      %p63 = scmp.ne.s32.totalorder %s55, %s57
      %p64 = scmp.eq.s32.totalorder %s26, 1
      %p65 = por %p63, %p64
      %p66 = scmp.ne.s32.totalorder %s57, %s58
      %p67 = scmp.eq.s32.totalorder %s26, 0
      %p68 = por %p66, %p67
      %p69 = scmp.ne.s32.totalorder %s57, %s58
      %p70 = scmp.eq.s32.totalorder %s27, 1
      %p71 = por %p69, %p70
      %p73 = scmp.ne.s32.totalorder %s58, %s72
      %p74 = scmp.eq.s32.totalorder %s27, 0
      %p75 = por %p73, %p74
      %s77 = sadd.s32 %s76, 1
      %p80 = scmp.eq.s32.totalorder %s21, 1
      %p81 = scmp.ne.s32.totalorder %s76, %s78
      %p82 = scmp.eq.s32.totalorder %s21, 0
      %p83 = por %p81, %p82
      %p84 = scmp.ne.s32.totalorder %s76, %s78
      %p85 = scmp.eq.s32.totalorder %s26, 1
      %p86 = por %p84, %p85
      %p87 = scmp.ne.s32.totalorder %s78, %s79
      %p88 = scmp.eq.s32.totalorder %s26, 0
      %p89 = por %p87, %p88
      %p90 = scmp.ne.s32.totalorder %s78, %s79
      %p91 = scmp.eq.s32.totalorder %s27, 1
      %p92 = por %p90, %p91
      %p94 = scmp.ne.s32.totalorder %s79, %s93
      %p95 = scmp.eq.s32.totalorder %s27, 0
      %p96 = por %p94, %p95
      %s98 = sadd.s32 %s97, 1
      %p101 = scmp.eq.s32.totalorder %s21, 1
      %p102 = scmp.ne.s32.totalorder %s97, %s99
      %p103 = scmp.eq.s32.totalorder %s21, 0
      %p104 = por %p102, %p103
      %p105 = scmp.ne.s32.totalorder %s97, %s99
      %p106 = scmp.eq.s32.totalorder %s26, 1
      %p107 = por %p105, %p106
      %p108 = scmp.ne.s32.totalorder %s99, %s100
      %p109 = scmp.eq.s32.totalorder %s26, 0
      %p110 = por %p108, %p109
      %p111 = scmp.ne.s32.totalorder %s99, %s100
      %p112 = scmp.eq.s32.totalorder %s27, 1
      %p113 = por %p111, %p112
      %p115 = scmp.ne.s32.totalorder %s100, %s114
      %p116 = scmp.eq.s32.totalorder %s27, 0
      %p117 = por %p115, %p116
      %s119 = sadd.s32 %s118, 1
      %p122 = scmp.eq.s32.totalorder %s21, 1
      %p123 = scmp.ne.s32.totalorder %s118, %s120
      %p124 = scmp.eq.s32.totalorder %s21, 0
      %p125 = por %p123, %p124
      %p126 = scmp.ne.s32.totalorder %s118, %s120
      %p127 = scmp.eq.s32.totalorder %s26, 1
      %p128 = por %p126, %p127
      %p129 = scmp.ne.s32.totalorder %s120, %s121
      %p130 = scmp.eq.s32.totalorder %s26, 0
      %p131 = por %p129, %p130
      %p132 = scmp.ne.s32.totalorder %s120, %s121
      %p133 = scmp.eq.s32.totalorder %s27, 1
      %p134 = por %p132, %p133
      %p136 = scmp.ne.s32.totalorder %s121, %s135
      %p137 = scmp.eq.s32.totalorder %s27, 0
      %p138 = por %p136, %p137
      %s140 = sadd.s32 %s139, 1
      %p143 = scmp.eq.s32.totalorder %s21, 1
      %p144 = scmp.ne.s32.totalorder %s139, %s141
      %p145 = scmp.eq.s32.totalorder %s21, 0
      %p146 = por %p144, %p145
      %p147 = scmp.ne.s32.totalorder %s139, %s141
      %p148 = scmp.eq.s32.totalorder %s26, 1
      %p149 = por %p147, %p148
      %p150 = scmp.ne.s32.totalorder %s141, %s142
      %p151 = scmp.eq.s32.totalorder %s26, 0
      %p152 = por %p150, %p151
      %p153 = scmp.ne.s32.totalorder %s141, %s142
      %p154 = scmp.eq.s32.totalorder %s27, 1
      %p155 = por %p153, %p154
      %p157 = scmp.ne.s32.totalorder %s142, %s156
      %p158 = scmp.eq.s32.totalorder %s27, 0
      %p159 = por %p157, %p158
      %s161 = sadd.s32 %s160, 1
      %p164 = scmp.eq.s32.totalorder %s21, 1
      %p165 = scmp.ne.s32.totalorder %s160, %s162
      %p166 = scmp.eq.s32.totalorder %s21, 0
      %p167 = por %p165, %p166
      %p168 = scmp.ne.s32.totalorder %s160, %s162
      %p169 = scmp.eq.s32.totalorder %s26, 1
      %p170 = por %p168, %p169
      %p171 = scmp.ne.s32.totalorder %s162, %s163
      %p172 = scmp.eq.s32.totalorder %s26, 0
      %p173 = por %p171, %p172
      %p174 = scmp.ne.s32.totalorder %s162, %s163
      %p175 = scmp.eq.s32.totalorder %s27, 1
      %p176 = por %p174, %p175
      %p178 = scmp.ne.s32.totalorder %s163, %s177
      %p179 = scmp.eq.s32.totalorder %s27, 0
      %p180 = por %p178, %p179
      %s181 = ssub.s32 %s21, %s28
      %p182 = scmp.eq.s32.totalorder %s181, 0
      %s184 = sadd.s32 %s183, 1
      %s185 = scalar_select %p182, %s183, %s184
      %p188 = pneg %p182
      %p189 = scmp.eq.s32.totalorder %s21, 1
      %p190 = por %p188, %p189
      %p191 = scmp.ne.s32.totalorder %s183, %s186
      %p192 = scmp.eq.s32.totalorder %s21, 0
      %p193 = por %p191, %p192
      %p194 = scmp.ne.s32.totalorder %s183, %s186
      %p195 = scmp.eq.s32.totalorder %s26, 1
      %p196 = por %p194, %p195
      %p197 = scmp.ne.s32.totalorder %s186, %s187
      %p198 = scmp.eq.s32.totalorder %s26, 0
      %p199 = por %p197, %p198
      %p200 = scmp.ne.s32.totalorder %s186, %s187
      %p201 = scmp.eq.s32.totalorder %s27, 1
      %p202 = por %p200, %p201
      %p204 = scmp.ne.s32.totalorder %s187, %s203
      %p205 = scmp.eq.s32.totalorder %s27, 0
      %p206 = por %p204, %p205
      %p207 = scmp.le.s32.totalorder 1, %s21
      %p208 = scmp.lt.s32.totalorder %s21, 3
      %p209 = pnand %p207, %p208
      %p210 = pneg %p209
      // Predicated region
      $region9: #{tpu_custom_call.1} parent=5 // pred_check
        _
      $region10: #{tpu_custom_call.1} parent=5 // pred_check_branch
        %212 = sbr.rel (%p209) target = $region12
      $region11: #{tpu_custom_call.1} parent=5 // pred_region
        %s213 = ssub.s32 %s21, 1
        // Predicated region
        $region13: #{tpu_custom_call.1} parent=11 // pred_check
          %p214 = pneg %p68
        $region14: #{tpu_custom_call.1} parent=11 // pred_check_branch
          %216 = sbr.rel (%p214) target = $region16
        $region15: #{tpu_custom_call.1} parent=11 // pred_region
          %s218 = ssub.s32 1024, 1024
          %219 = vsyncadd [#allocation6], %s218
          %s220 = sshll.u32 [#allocation5], 4
          %s221 = int_to_ptr.vmem [resolvable:$true] %s220
          %226 = dma.hbm_to_vmem [thread:$0]  %s1, 1024, %s221, [#allocation6], 64, 64, 4
        $region16: #{tpu_custom_call.1} parent=11 // pred_fallthru
          _
        // Predicated region
        $region17: #{tpu_custom_call.1} parent=11 // pred_check
          %p227 = pneg %p89
        $region18: #{tpu_custom_call.1} parent=11 // pred_check_branch
          %229 = sbr.rel (%p227) target = $region20
        $region19: #{tpu_custom_call.1} parent=11 // pred_region
          _
        $region20: #{tpu_custom_call.1} parent=11 // pred_fallthru
          _
        // Predicated region
        $region21: #{tpu_custom_call.1} parent=11 // pred_check
          %p230 = pneg %p110
        $region22: #{tpu_custom_call.1} parent=11 // pred_check_branch
          %232 = sbr.rel (%p230) target = $region24
        $region23: #{tpu_custom_call.1} parent=11 // pred_region
          %s234 = ssub.s32 1024, 1024
          %235 = vsyncadd [#allocation6], %s234
          %s236 = sshll.u32 [#allocation7], 4
          %s237 = int_to_ptr.vmem [resolvable:$true] %s236
          %242 = dma.hbm_to_vmem [thread:$0]  %s3, 1024, %s237, [#allocation6], 64, 64, 4
        $region24: #{tpu_custom_call.1} parent=11 // pred_fallthru
          _
        // Predicated region
        $region25: #{tpu_custom_call.1} parent=11 // pred_check
          %p243 = pneg %p131
        $region26: #{tpu_custom_call.1} parent=11 // pred_check_branch
          %245 = sbr.rel (%p243) target = $region28
        $region27: #{tpu_custom_call.1} parent=11 // pred_region
          _
        $region28: #{tpu_custom_call.1} parent=11 // pred_fallthru
          _
        // Predicated region
        $region29: #{tpu_custom_call.1} parent=11 // pred_check
          %p246 = pneg %p152
        $region30: #{tpu_custom_call.1} parent=11 // pred_check_branch
          %248 = sbr.rel (%p246) target = $region32
        $region31: #{tpu_custom_call.1} parent=11 // pred_region
          %s250 = ssub.s32 1024, 1024
          %251 = vsyncadd [#allocation9], %s250
          %s252 = sshll.u32 [#allocation8], 4
          %s253 = int_to_ptr.vmem [resolvable:$true] %s252
          %258 = dma.hbm_to_vmem [thread:$0]  %s5, 1024, %s253, [#allocation9], 64, 64, 4
        $region32: #{tpu_custom_call.1} parent=11 // pred_fallthru
          _
        // Predicated region
        $region33: #{tpu_custom_call.1} parent=11 // pred_check
          %p259 = pneg %p173
        $region34: #{tpu_custom_call.1} parent=11 // pred_check_branch
          %261 = sbr.rel (%p259) target = $region36
        $region35: #{tpu_custom_call.1} parent=11 // pred_region
          _
        $region36: #{tpu_custom_call.1} parent=11 // pred_fallthru
          _
      $region12: #{tpu_custom_call.1} parent=5 // pred_fallthru
        _
      %p262 = scmp.lt.s32.totalorder %s21, 2
      // Predicated region
      $region37: #{tpu_custom_call.1} parent=5 // pred_check
        %p263 = pneg %p262
      $region38: #{tpu_custom_call.1} parent=5 // pred_check_branch
        %265 = sbr.rel (%p263) target = $region40
      $region39: #{tpu_custom_call.1} parent=5 // pred_region
        // Predicated region
        $region41: #{tpu_custom_call.1} parent=39 // pred_check
          %p266 = pneg %p41
        $region42: #{tpu_custom_call.1} parent=39 // pred_check_branch
          %268 = sbr.rel (%p266) target = $region44
        $region43: #{tpu_custom_call.1} parent=39 // pred_region
          %s269 = sand.u32 %s31, 1
          %s270 = scalar_lea.sflag [#allocation3], %s269
          %s271 = sand.u32 %s31, 1
          %s272 = smul.addr %s271, 8
          %s273 = scalar_lea.vmem [#allocation2], %s272
          %s274 = smul.u32 2, %s21
          %s276 = ssub.s32 128, 128
          %277 = vsyncadd %s270, %s276
          %s278 = smul.addr %s274, 64
          %s279 = scalar_lea.hbm %s0, %s278
          %s280 = sshll.u32 %s273, 4
          %s281 = int_to_ptr.vmem [resolvable:$true] %s280
          %286 = dma.hbm_to_vmem [thread:$0]  %s279, 128, %s281, %s270, 64, 64, 4
        $region44: #{tpu_custom_call.1} parent=39 // pred_fallthru
          _
      $region40: #{tpu_custom_call.1} parent=5 // pred_fallthru
        _
      %p287 = scmp.le.s32.totalorder 1, %s21
      %p288 = scmp.lt.s32.totalorder %s21, 3
      %p289 = pnand %p287, %p288
      %p290 = pneg %p289
      // Predicated region
      $region45: #{tpu_custom_call.1} parent=5 // pred_check
        _
      $region46: #{tpu_custom_call.1} parent=5 // pred_check_branch
        %292 = sbr.rel (%p289) target = $region48
      $region47: #{tpu_custom_call.1} parent=5 // pred_region
        %s293 = ssub.s32 %s21, 1
        %s294 = sand.u32 %s34, 1
        %s295 = scalar_lea.sflag [#allocation3], %s294
        %s296 = sand.u32 %s34, 1
        %s297 = smul.addr %s296, 8
        %s298 = scalar_lea.vmem [#allocation2], %s297
        // Predicated region
        $region49: #{tpu_custom_call.1} parent=47 // pred_check
          %p299 = pneg %p47
        $region50: #{tpu_custom_call.1} parent=47 // pred_check_branch
          %301 = sbr.rel (%p299) target = $region52
        $region51: #{tpu_custom_call.1} parent=47 // pred_region
          %302 = dma.done %s295, 128
        $region52: #{tpu_custom_call.1} parent=47 // pred_fallthru
          _
        // Predicated region
        $region53: #{tpu_custom_call.1} parent=47 // pred_check
          %p303 = pneg %p68
        $region54: #{tpu_custom_call.1} parent=47 // pred_check_branch
          %305 = sbr.rel (%p303) target = $region56
        $region55: #{tpu_custom_call.1} parent=47 // pred_region
          %306 = dma.done [#allocation6], 1024
        $region56: #{tpu_custom_call.1} parent=47 // pred_fallthru
          _
        // Predicated region
        $region57: #{tpu_custom_call.1} parent=47 // pred_check
          %p307 = pneg %p110
        $region58: #{tpu_custom_call.1} parent=47 // pred_check_branch
          %309 = sbr.rel (%p307) target = $region60
        $region59: #{tpu_custom_call.1} parent=47 // pred_region
          %310 = dma.done [#allocation6], 1024
        $region60: #{tpu_custom_call.1} parent=47 // pred_fallthru
          _
        // Predicated region
        $region61: #{tpu_custom_call.1} parent=47 // pred_check
          %p311 = pneg %p152
        $region62: #{tpu_custom_call.1} parent=47 // pred_check_branch
          %313 = sbr.rel (%p311) target = $region64
        $region63: #{tpu_custom_call.1} parent=47 // pred_region
          %314 = dma.done [#allocation9], 1024
        $region64: #{tpu_custom_call.1} parent=47 // pred_fallthru
          _
        %s315 = sand.u32 %s34, 1
        %s316 = scalar_lea.sflag [#allocation3], %s315
        %s317 = sand.u32 %s34, 1
        %s318 = smul.addr %s317, 8
        %s319 = scalar_lea.vmem [#allocation2], %s318
        %p320 = pneg %p47
        %p321 = pneg %p44
        %p322 = pneg %p68
        %p323 = pneg %p65
        %p324 = pneg %p89
        %p325 = pneg %p86
        %p326 = pneg %p110
        %p327 = pneg %p107
        %p328 = pneg %p131
        %p329 = pneg %p128
        %p330 = pneg %p152
        %p331 = pneg %p149
        %p332 = pneg %p173
        %p333 = pneg %p170
        %p334 = pneg %p199
        %p335 = pneg %p196
        %s336 = sand.u32 %s186, 1
        %s337 = scalar_lea.sflag [#allocation4], %s336
        %s338 = sand.u32 %s186, 1
        %s339 = smul.addr %s338, 16
        %s340 = scalar_lea.vmem [#allocation10], %s339
        %s341 = smul.u32 2, %s26
        %s342 = smul.u32 2, %s26
        %v344 = vld [vmem:[%s298] sm:$0xf]
        %v345 = vld [vmem:[%s298 + $0x4] sm:$0xf]
        %v346 = vld [vmem:[#allocation5] sm:$0xf]
        %v347 = vld [vmem:[#allocation5 + $0x4] sm:$0xf]
        %v348 = vld [vmem:[#allocation5 + $0x8] sm:$0xf]
        %v349 = vld [vmem:[#allocation5 + $0xc] sm:$0xf]
        %v350 = vld [vmem:[#allocation5 + $0x10] sm:$0xf]
        %v351 = vld [vmem:[#allocation5 + $0x14] sm:$0xf]
        %v352 = vld [vmem:[#allocation5 + $0x18] sm:$0xf]
        %v353 = vld [vmem:[#allocation5 + $0x1c] sm:$0xf]
        %v354 = vld [vmem:[#allocation5 + $0x20] sm:$0xf]
        %v355 = vld [vmem:[#allocation5 + $0x24] sm:$0xf]
        %v356 = vld [vmem:[#allocation5 + $0x28] sm:$0xf]
        %v357 = vld [vmem:[#allocation5 + $0x2c] sm:$0xf]
        %v358 = vld [vmem:[#allocation5 + $0x30] sm:$0xf]
        %v359 = vld [vmem:[#allocation5 + $0x34] sm:$0xf]
        %v360 = vld [vmem:[#allocation5 + $0x38] sm:$0xf]
        %v361 = vld [vmem:[#allocation5 + $0x3c] sm:$0xf]
        %v362 = vld [vmem:[%s2] sm:$0x1]
        %v364 = vlaneseq
        %v365 = vshrl.u32 %v364, 7
        %v366 = vsub.s32 0, %v365
        %v367 = vrot.slane %v362, %v366
        %v371 = vunpack.c.l.b16 %v344
        %v372 = vunpack.c.l.b16 %v345
        %v373 = vpack.c.b16 %v372, %v371
        %v391 = vunpack.c.l.b16 %v346
        %v392 = vunpack.c.l.b16 %v347
        %v393 = vunpack.c.l.b16 %v348
        %v394 = vunpack.c.l.b16 %v349
        %v395 = vunpack.c.l.b16 %v350
        %v396 = vunpack.c.l.b16 %v351
        %v397 = vunpack.c.l.b16 %v352
        %v398 = vunpack.c.l.b16 %v353
        %v399 = vunpack.c.l.b16 %v354
        %v400 = vunpack.c.l.b16 %v355
        %v401 = vunpack.c.l.b16 %v356
        %v402 = vunpack.c.l.b16 %v357
        %v403 = vunpack.c.l.b16 %v358
        %v404 = vunpack.c.l.b16 %v359
        %v405 = vunpack.c.l.b16 %v360
        %v406 = vunpack.c.l.b16 %v361
        %v407 = vpack.c.b16 %v392, %v391
        %v408 = vpack.c.b16 %v394, %v393
        %v409 = vpack.c.b16 %v396, %v395
        %v410 = vpack.c.b16 %v398, %v397
        %v411 = vpack.c.b16 %v400, %v399
        %v412 = vpack.c.b16 %v402, %v401
        %v413 = vpack.c.b16 %v404, %v403
        %v414 = vpack.c.b16 %v406, %v405
        %423 = vmatprep.subr.bf16.mxu0 0
        %424 = vmatpush1.bf16.msra.mxu0 %v407
        %425 = vmatprep.subr.bf16.mxu0 0
        %426 = vmatpush1.bf16.msra.mxu0 %v408
        %427 = vmatprep.subr.bf16.mxu0 0
        %428 = vmatpush1.bf16.msra.mxu0 %v409
        %429 = vmatprep.subr.bf16.mxu0 0
        %430 = vmatpush1.bf16.msra.mxu0 %v410
        %431 = vmatprep.subr.bf16.mxu0 0
        %432 = vmatpush1.bf16.msra.mxu0 %v411
        %433 = vmatprep.subr.bf16.mxu0 0
        %434 = vmatpush1.bf16.msra.mxu0 %v412
        %435 = vmatprep.subr.bf16.mxu0 0
        %436 = vmatpush1.bf16.msra.mxu0 %v413
        %437 = vmatprep.subr.bf16.mxu0 0
        %438 = vmatpush1.bf16.msra.mxu0 %v414
        %439 = vmatprep.subr.bf16.mxu0 0
        %440 = vmatpush1.bf16.msra.mxu0 0
        %441 = vmatprep.subr.bf16.mxu0 0
        %442 = vmatpush1.bf16.msra.mxu0 0
        %443 = vmatprep.subr.bf16.mxu0 0
        %444 = vmatpush1.bf16.msra.mxu0 0
        %445 = vmatprep.subr.bf16.mxu0 0
        %446 = vmatpush1.bf16.msra.mxu0 0
        %447 = vmatprep.subr.bf16.mxu0 0
        %448 = vmatpush1.bf16.msra.mxu0 0
        %449 = vmatprep.subr.bf16.mxu0 0
        %450 = vmatpush1.bf16.msra.mxu0 0
        %451 = vmatprep.subr.bf16.mxu0 0
        %452 = vmatpush1.bf16.msra.mxu0 0
        %453 = vmatprep.subr.bf16.mxu0 0
        %454 = vmatpush1.bf16.msra.mxu0 0
        %455 = vmatprep.mubr.bf16.mxu0 0
        %456 = vmatmul.mubr.bf16.gmra.mrb[0].mxu0 %v373
        %v457 = vpop.f32.mrb[0].mxu0
        %v458 = vadd.f32 %v367, %v457
        %v459 = vpop.f32.mrb[0].mxu0
        %v460 = vpop.f32.mrb[0].mxu0
        %v461 = vadd.f32 %v367, %v460
        %v462 = vpop.f32.mrb[0].mxu0
        %463 = vdwg.mxu0
        %v464 = vmul.f32 %v458, 0.5
        %v465 = vmul.f32 %v461, 0.5
        %v466 = vtanh.pop %v464
        %v467 = vtanh.pop %v465
        %v468 = vmul.f32 %v466, 0.5
        %v469 = vmul.f32 %v467, 0.5
        %v470 = vadd.f32 %v468, 0.5
        %v471 = vadd.f32 %v469, 0.5
        %v472 = vld [vmem:[#allocation7] sm:$0xf]
        %v473 = vld [vmem:[#allocation7 + $0x4] sm:$0xf]
        %v474 = vld [vmem:[#allocation7 + $0x8] sm:$0xf]
        %v475 = vld [vmem:[#allocation7 + $0xc] sm:$0xf]
        %v476 = vld [vmem:[#allocation7 + $0x10] sm:$0xf]
        %v477 = vld [vmem:[#allocation7 + $0x14] sm:$0xf]
        %v478 = vld [vmem:[#allocation7 + $0x18] sm:$0xf]
        %v479 = vld [vmem:[#allocation7 + $0x1c] sm:$0xf]
        %v480 = vld [vmem:[#allocation7 + $0x20] sm:$0xf]
        %v481 = vld [vmem:[#allocation7 + $0x24] sm:$0xf]
        %v482 = vld [vmem:[#allocation7 + $0x28] sm:$0xf]
        %v483 = vld [vmem:[#allocation7 + $0x2c] sm:$0xf]
        %v484 = vld [vmem:[#allocation7 + $0x30] sm:$0xf]
        %v485 = vld [vmem:[#allocation7 + $0x34] sm:$0xf]
        %v486 = vld [vmem:[#allocation7 + $0x38] sm:$0xf]
        %v487 = vld [vmem:[#allocation7 + $0x3c] sm:$0xf]
        %v488 = vld [vmem:[%s4] sm:$0x1]
        %v489 = vpack.c.bf16 %v471, %v470
        %v491 = vlaneseq
        %v492 = vshrl.u32 %v491, 7
        %v493 = vsub.s32 0, %v492
        %v494 = vrot.slane %v488, %v493
        %v512 = vunpack.c.l.b16 %v472
        %v513 = vunpack.c.l.b16 %v473
        %v514 = vunpack.c.l.b16 %v474
        %v515 = vunpack.c.l.b16 %v475
        %v516 = vunpack.c.l.b16 %v476
        %v517 = vunpack.c.l.b16 %v477
        %v518 = vunpack.c.l.b16 %v478
        %v519 = vunpack.c.l.b16 %v479
        %v520 = vunpack.c.l.b16 %v480
        %v521 = vunpack.c.l.b16 %v481
        %v522 = vunpack.c.l.b16 %v482
        %v523 = vunpack.c.l.b16 %v483
        %v524 = vunpack.c.l.b16 %v484
        %v525 = vunpack.c.l.b16 %v485
        %v526 = vunpack.c.l.b16 %v486
        %v527 = vunpack.c.l.b16 %v487
        %v528 = vpack.c.b16 %v513, %v512
        %v529 = vpack.c.b16 %v515, %v514
        %v530 = vpack.c.b16 %v517, %v516
        %v531 = vpack.c.b16 %v519, %v518
        %v532 = vpack.c.b16 %v521, %v520
        %v533 = vpack.c.b16 %v523, %v522
        %v534 = vpack.c.b16 %v525, %v524
        %v535 = vpack.c.b16 %v527, %v526
        %544 = vmatprep.subr.bf16.mxu0 0
        %545 = vmatpush1.bf16.msra.mxu0 %v528
        %546 = vmatprep.subr.bf16.mxu0 0
        %547 = vmatpush1.bf16.msra.mxu0 %v529
        %548 = vmatprep.subr.bf16.mxu0 0
        %549 = vmatpush1.bf16.msra.mxu0 %v530
        %550 = vmatprep.subr.bf16.mxu0 0
        %551 = vmatpush1.bf16.msra.mxu0 %v531
        %552 = vmatprep.subr.bf16.mxu0 0
        %553 = vmatpush1.bf16.msra.mxu0 %v532
        %554 = vmatprep.subr.bf16.mxu0 0
        %555 = vmatpush1.bf16.msra.mxu0 %v533
        %556 = vmatprep.subr.bf16.mxu0 0
        %557 = vmatpush1.bf16.msra.mxu0 %v534
        %558 = vmatprep.subr.bf16.mxu0 0
        %559 = vmatpush1.bf16.msra.mxu0 %v535
        %560 = vmatprep.subr.bf16.mxu0 0
        %561 = vmatpush1.bf16.msra.mxu0 0
        %562 = vmatprep.subr.bf16.mxu0 0
        %563 = vmatpush1.bf16.msra.mxu0 0
        %564 = vmatprep.subr.bf16.mxu0 0
        %565 = vmatpush1.bf16.msra.mxu0 0
        %566 = vmatprep.subr.bf16.mxu0 0
        %567 = vmatpush1.bf16.msra.mxu0 0
        %568 = vmatprep.subr.bf16.mxu0 0
        %569 = vmatpush1.bf16.msra.mxu0 0
        %570 = vmatprep.subr.bf16.mxu0 0
        %571 = vmatpush1.bf16.msra.mxu0 0
        %572 = vmatprep.subr.bf16.mxu0 0
        %573 = vmatpush1.bf16.msra.mxu0 0
        %574 = vmatprep.subr.bf16.mxu0 0
        %575 = vmatpush1.bf16.msra.mxu0 0
        %576 = vmatprep.mubr.bf16.mxu0 0
        %577 = vmatmul.mubr.bf16.gmra.mrb[0].mxu0 %v489
        %v578 = vpop.f32.mrb[0].mxu0
        %v579 = vadd.f32 %v494, %v578
        %v580 = vpop.f32.mrb[0].mxu0
        %v581 = vpop.f32.mrb[0].mxu0
        %v582 = vadd.f32 %v494, %v581
        %v583 = vpop.f32.mrb[0].mxu0
        %584 = vdwg.mxu0
        %v585 = vtanh.pop %v579
        %v586 = vtanh.pop %v582
        %v587 = vld [vmem:[#allocation8] sm:$0xf]
        %v588 = vld [vmem:[#allocation8 + $0x4] sm:$0xf]
        %v589 = vld [vmem:[#allocation8 + $0x8] sm:$0xf]
        %v590 = vld [vmem:[#allocation8 + $0xc] sm:$0xf]
        %v591 = vld [vmem:[#allocation8 + $0x10] sm:$0xf]
        %v592 = vld [vmem:[#allocation8 + $0x14] sm:$0xf]
        %v593 = vld [vmem:[#allocation8 + $0x18] sm:$0xf]
        %v594 = vld [vmem:[#allocation8 + $0x1c] sm:$0xf]
        %v595 = vld [vmem:[#allocation8 + $0x20] sm:$0xf]
        %v596 = vld [vmem:[#allocation8 + $0x24] sm:$0xf]
        %v597 = vld [vmem:[#allocation8 + $0x28] sm:$0xf]
        %v598 = vld [vmem:[#allocation8 + $0x2c] sm:$0xf]
        %v599 = vld [vmem:[#allocation8 + $0x30] sm:$0xf]
        %v600 = vld [vmem:[#allocation8 + $0x34] sm:$0xf]
        %v601 = vld [vmem:[#allocation8 + $0x38] sm:$0xf]
        %v602 = vld [vmem:[#allocation8 + $0x3c] sm:$0xf]
        %v603 = vld [vmem:[%s6] sm:$0x1]
        %v604 = vpack.c.bf16 %v586, %v585
        %v606 = vlaneseq
        %v607 = vshrl.u32 %v606, 7
        %v608 = vsub.s32 0, %v607
        %v609 = vrot.slane %v603, %v608
        %v627 = vunpack.c.l.b16 %v587
        %v628 = vunpack.c.l.b16 %v588
        %v629 = vunpack.c.l.b16 %v589
        %v630 = vunpack.c.l.b16 %v590
        %v631 = vunpack.c.l.b16 %v591
        %v632 = vunpack.c.l.b16 %v592
        %v633 = vunpack.c.l.b16 %v593
        %v634 = vunpack.c.l.b16 %v594
        %v635 = vunpack.c.l.b16 %v595
        %v636 = vunpack.c.l.b16 %v596
        %v637 = vunpack.c.l.b16 %v597
        %v638 = vunpack.c.l.b16 %v598
        %v639 = vunpack.c.l.b16 %v599
        %v640 = vunpack.c.l.b16 %v600
        %v641 = vunpack.c.l.b16 %v601
        %v642 = vunpack.c.l.b16 %v602
        %v643 = vpack.c.b16 %v628, %v627
        %v644 = vpack.c.b16 %v630, %v629
        %v645 = vpack.c.b16 %v632, %v631
        %v646 = vpack.c.b16 %v634, %v633
        %v647 = vpack.c.b16 %v636, %v635
        %v648 = vpack.c.b16 %v638, %v637
        %v649 = vpack.c.b16 %v640, %v639
        %v650 = vpack.c.b16 %v642, %v641
        %659 = vmatprep.subr.bf16.mxu0 0
        %660 = vmatpush1.bf16.msra.mxu0 %v643
        %661 = vmatprep.subr.bf16.mxu0 0
        %662 = vmatpush1.bf16.msra.mxu0 %v644
        %663 = vmatprep.subr.bf16.mxu0 0
        %664 = vmatpush1.bf16.msra.mxu0 %v645
        %665 = vmatprep.subr.bf16.mxu0 0
        %666 = vmatpush1.bf16.msra.mxu0 %v646
        %667 = vmatprep.subr.bf16.mxu0 0
        %668 = vmatpush1.bf16.msra.mxu0 %v647
        %669 = vmatprep.subr.bf16.mxu0 0
        %670 = vmatpush1.bf16.msra.mxu0 %v648
        %671 = vmatprep.subr.bf16.mxu0 0
        %672 = vmatpush1.bf16.msra.mxu0 %v649
        %673 = vmatprep.subr.bf16.mxu0 0
        %674 = vmatpush1.bf16.msra.mxu0 %v650
        %675 = vmatprep.subr.bf16.mxu0 0
        %676 = vmatpush1.bf16.msra.mxu0 0
        %677 = vmatprep.subr.bf16.mxu0 0
        %678 = vmatpush1.bf16.msra.mxu0 0
        %679 = vmatprep.subr.bf16.mxu0 0
        %680 = vmatpush1.bf16.msra.mxu0 0
        %681 = vmatprep.subr.bf16.mxu0 0
        %682 = vmatpush1.bf16.msra.mxu0 0
        %683 = vmatprep.subr.bf16.mxu0 0
        %684 = vmatpush1.bf16.msra.mxu0 0
        %685 = vmatprep.subr.bf16.mxu0 0
        %686 = vmatpush1.bf16.msra.mxu0 0
        %687 = vmatprep.subr.bf16.mxu0 0
        %688 = vmatpush1.bf16.msra.mxu0 0
        %689 = vmatprep.subr.bf16.mxu0 0
        %690 = vmatpush1.bf16.msra.mxu0 0
        %691 = vmatprep.mubr.bf16.mxu0 0
        %692 = vmatmul.mubr.bf16.gmra.mrb[0].mxu0 %v604
        %v693 = vpop.f32.mrb[0].mxu0
        %v694 = vadd.f32 %v609, %v693
        %v695 = vpop.f32.mrb[0].mxu0
        %v696 = vpop.f32.mrb[0].mxu0
        %v697 = vadd.f32 %v609, %v696
        %v698 = vpop.f32.mrb[0].mxu0
        %699 = vdwg.mxu0
        %700 = vst [vmem:[%s340] sm:$0xff] %v694
        %701 = vst [vmem:[%s340 + $0x8] sm:$0xff] %v697
        %s702 = sand.u32 %s186, 1
        %s703 = scalar_lea.sflag [#allocation4], %s702
        %s704 = sand.u32 %s186, 1
        %s705 = smul.addr %s704, 16
        %s706 = scalar_lea.vmem [#allocation10], %s705
        // Predicated region
        $region65: #{tpu_custom_call.1} parent=47 // pred_check
          %p707 = pneg %p196
        $region66: #{tpu_custom_call.1} parent=47 // pred_check_branch
          %709 = sbr.rel (%p707) target = $region68
        $region67: #{tpu_custom_call.1} parent=47 // pred_region
          %s710 = smul.u32 2, %s26
          %s712 = ssub.s32 256, 256
          %713 = vsyncadd %s703, %s712
          %s714 = smul.addr %s710, 128
          %s715 = scalar_lea.hbm %s7, %s714
          %s716 = sshll.u32 %s706, 4
          %s717 = int_to_ptr.vmem [resolvable:$true] %s716
          %722 = dma.vmem_to_hbm [thread:$0]  %s717, 256, %s715, %s703, 128, 128, 8
        $region68: #{tpu_custom_call.1} parent=47 // pred_fallthru
          _
      $region48: #{tpu_custom_call.1} parent=5 // pred_fallthru
        _
      %p723 = scmp.le.s32.totalorder 2, %s21
      // Predicated region
      $region69: #{tpu_custom_call.1} parent=5 // pred_check
        %p724 = pneg %p723
      $region70: #{tpu_custom_call.1} parent=5 // pred_check_branch
        %726 = sbr.rel (%p724) target = $region72
      $region71: #{tpu_custom_call.1} parent=5 // pred_region
        %s727 = ssub.s32 %s21, 2
        // Predicated region
        $region73: #{tpu_custom_call.1} parent=71 // pred_check
          %p728 = pneg %p202
        $region74: #{tpu_custom_call.1} parent=71 // pred_check_branch
          %730 = sbr.rel (%p728) target = $region76
        $region75: #{tpu_custom_call.1} parent=71 // pred_region
          %s731 = sand.u32 %s187, 1
          %s732 = scalar_lea.sflag [#allocation4], %s731
          %s733 = sand.u32 %s187, 1
          %s734 = smul.addr %s733, 16
          %s735 = scalar_lea.vmem [#allocation10], %s734
          %736 = dma.done %s732, 256
        $region76: #{tpu_custom_call.1} parent=71 // pred_fallthru
          _
      $region72: #{tpu_custom_call.1} parent=5 // pred_fallthru
        _
    $region6: #{tpu_custom_call.1} parent=1 // loop_footer
      %s25 = sadd.s32 1, %s21
    $region7: #{tpu_custom_call.1} parent=1 // loop_footer_branch
      %20 = sbr.rel target = $region3
    $region8: #{tpu_custom_call.1} parent=1 // loop_exit
      _
    %737 = vsyncpa [#allocation3], 1
    %s738 = scalar_lea.sflag [#allocation3], 1
    %739 = vsyncpa %s738, 1
    %740 = vsyncpa [#allocation6], 1
    %741 = vsyncpa [#allocation9], 1
    %742 = vsyncpa [#allocation4], 1
    %s743 = scalar_lea.sflag [#allocation4], 1
    %744 = vsyncpa %s743, 1

</llo_original>
